<compile_context>
chip_gen: v5e
topology: v5e:2x2
jax: 0.10.0
libtpu: 0.0.40
codegen_flags: <defaults>
</compile_context>

<pallas_src>
import functools
import numpy as np

import jax
import jax.numpy as jnp
from jax.experimental import pallas as pl
from jax.experimental.pallas import tpu as pltpu

PAD = 0  # Constants.PAD


# ----------------------------------------------------------------------------
# Sinusoid position table (same math as the PyTorch reference, built in numpy).
# ----------------------------------------------------------------------------
def get_sinusoid_encoding_table(n_position, d_hid, padding_idx=None):
    def cal_angle(position, hid_idx):
        return position / np.power(10000, 2 * (hid_idx // 2) / d_hid)

    table = np.array(
        [[cal_angle(pos, j) for j in range(d_hid)] for pos in range(n_position)],
        dtype=np.float64,
    )
    table[:, 0::2] = np.sin(table[:, 0::2])
    table[:, 1::2] = np.cos(table[:, 1::2])
    if padding_idx is not None:
        table[padding_idx] = 0.0
    return jnp.asarray(table, dtype=jnp.float32)


# ----------------------------------------------------------------------------
# In-kernel helpers.
# ----------------------------------------------------------------------------
def _layer_norm(x, gamma, beta, eps=1e-5):
    mu = jnp.mean(x, axis=-1, keepdims=True)
    var = jnp.mean((x - mu) ** 2, axis=-1, keepdims=True)
    return (x - mu) * jax.lax.rsqrt(var + eps) * gamma + beta


# q @ k^T without materializing a transpose: contract the last dim of both.
_TRANS_B_DIMS = (((1,), (1,)), ((), ()))


# ----------------------------------------------------------------------------
# Fused Pallas kernel: the whole encoder layer stack for one batch element.
# Grid = (B, n_layers); the activation lives in a VMEM f32 scratch across the
# (arbitrary) layer axis and is written to HBM only after the last layer.
# ----------------------------------------------------------------------------
def encoder_stack_kernel(
    x_ref, keep_ref, npad_ref,
    wq_ref, bq_ref, wk_ref, bk_ref, wv_ref, bv_ref,
    fcw_ref, fcb_ref, ln1g_ref, ln1b_ref,
    w1_ref, b1_ref, w2_ref, b2_ref, ln2g_ref, ln2b_ref,
    out_ref, act_ref, *, n_head, d_k, d_v,
):
    l = pl.program_id(1)
    n_layers = pl.num_programs(1)

    # Layer 0: seed the resident activation from the HBM input block.
    @pl.when(l == 0)
    def _():
        act_ref[...] = x_ref[0].astype(jnp.float32)

    x = act_ref[...]                       # (L, D) f32, previous layer output
    keep = keep_ref[0]                     # (1, L) f32, 1.0 where KEY is not PAD
    npad = npad_ref[0]                     # (L, 1) f32, 1.0 where QUERY is not PAD

    bf = jnp.bfloat16
    x_bf = x.astype(bf)
    neg = jnp.float32(-1e30)               # finite mask: exp underflows to exactly 0

    # --- MultiHeadAttention ----------------------------------------------
    # Full-width projections keep the MXU lane dimension full.
    q = jnp.dot(x_bf, wq_ref[0], preferred_element_type=jnp.float32) + bq_ref[0]
    k = jnp.dot(x_bf, wk_ref[0], preferred_element_type=jnp.float32) + bk_ref[0]
    v = jnp.dot(x_bf, wv_ref[0], preferred_element_type=jnp.float32) + bv_ref[0]
    q = q * jnp.float32(1.0 / np.sqrt(d_k))    # fold 1/temperature into q once

    q_bf, k_bf, v_bf = q.astype(bf), k.astype(bf), v.astype(bf)
    fcw = fcw_ref[0]                       # (n_head, d_v, d_model) bf16

    o = None                               # fc output accumulated per head (no concat)
    for h in range(n_head):                # small static head loop
        qh = q_bf[:, h * d_k:(h + 1) * d_k]
        kh = k_bf[:, h * d_k:(h + 1) * d_k]
        vh = v_bf[:, h * d_v:(h + 1) * d_v]
        s = jax.lax.dot_general(qh, kh, _TRANS_B_DIMS,
                                preferred_element_type=jnp.float32)   # (L, L)
        s = jnp.where(keep > 0, s, neg)    # mask PAD keys (broadcast (1,L) over rows)
        m = jnp.max(s, axis=-1, keepdims=True)
        e = jnp.exp(s - m)
        p = e * pl.reciprocal(jnp.sum(e, axis=-1, keepdims=True), approx=True)
        ctx = jnp.dot(p.astype(bf), vh, preferred_element_type=jnp.float32)
        # fold output projection: concat(heads) @ fc_w == sum_h ctx_h @ fc_w[h]
        proj = jnp.dot(ctx.astype(bf), fcw[h], preferred_element_type=jnp.float32)
        o = proj if o is None else o + proj

    o = o + fcb_ref[0]
    o = _layer_norm(o + x, ln1g_ref[0], ln1b_ref[0])      # residual + post-LN
    o = o * npad                                          # enc_output *= non_pad_mask

    # --- PositionwiseFeedForward (Conv1d k=1 == matmul over channels) -----
    h1 = jnp.maximum(
        jnp.dot(o.astype(bf), w1_ref[0], preferred_element_type=jnp.float32)
        + b1_ref[0], 0.0)
    h2 = jnp.dot(h1.astype(bf), w2_ref[0], preferred_element_type=jnp.float32) + b2_ref[0]
    y = _layer_norm(h2 + o, ln2g_ref[0], ln2b_ref[0])     # residual + post-LN
    y = y * npad                                          # enc_output *= non_pad_mask

    act_ref[...] = y                       # stays resident for the next layer

    @pl.when(l == n_layers - 1)
    def _():
        out_ref[0] = y.astype(out_ref.dtype)


_PARAM_ORDER = (
    "w_qs", "b_qs", "w_ks", "b_ks", "w_vs", "b_vs",
    "fc_w", "fc_b", "ln1_g", "ln1_b",
    "w1", "b1", "w2", "b2", "ln2_g", "ln2_b",
)


def _vmem_limit_bytes():
    """~75% of physical VMEM, capped at 100 MiB (re-derived per generation)."""
    try:
        cap = int(getattr(pltpu.get_tpu_info(), "vmem_capacity_bytes"))
    except Exception:
        cap = 64 * 1024 * 1024          # conservative fallback (v7x physical)
    return int(min(cap * 3 // 4, 100 * 1024 * 1024))


def encoder_stack_pallas(x, keep_row, non_pad, params, *, n_head, d_k, d_v):
    B, L, D = x.shape
    weights = [params[name] for name in _PARAM_ORDER]
    n_layers = weights[0].shape[0]

    def _data_spec(shape):
        return pl.BlockSpec(shape, lambda b, l: (b, 0, 0))

    def _w_spec(w):
        nz = w.ndim - 1
        return pl.BlockSpec((1,) + w.shape[1:], lambda b, l, n=nz: (l,) + (0,) * n)

    in_specs = [
        _data_spec((1, L, D)),        # activations (only DMA'd when b changes)
        _data_spec((1, 1, L)),        # key keep mask  (1.0 = not PAD)
        _data_spec((1, L, 1)),        # query non-pad mask
    ] + [_w_spec(w) for w in weights]

    kern = functools.partial(encoder_stack_kernel, n_head=n_head, d_k=d_k, d_v=d_v)
    return pl.pallas_call(
        kern,
        out_shape=jax.ShapeDtypeStruct((B, L, D), x.dtype),
        grid_spec=pltpu.PrefetchScalarGridSpec(
            num_scalar_prefetch=0,
            grid=(B, n_layers),
            in_specs=in_specs,
            out_specs=pl.BlockSpec((1, L, D), lambda b, l: (b, 0, 0)),
            scratch_shapes=[pltpu.VMEM((L, D), jnp.float32)],   # resident activation
        ),
        compiler_params=pltpu.CompilerParams(
            dimension_semantics=("parallel", "arbitrary"),
            vmem_limit_bytes=_vmem_limit_bytes(),
        ),
    )(x, keep_row, non_pad, *weights)


# ----------------------------------------------------------------------------
# Encoder_high forward (mask vectors + optional positional embedding are glue;
# the whole layer stack runs inside one Pallas kernel).
# ----------------------------------------------------------------------------
def encoder_high_forward(src_emb, src_pos, stacked_params, pos_table,
                         *, n_head, d_k, d_v, needpos=False):
    keep = (src_pos != PAD).astype(jnp.float32)    # (B, L)
    keep_row = keep[:, None, :]                     # (B, 1, L)  key-axis mask
    non_pad = keep[:, :, None]                      # (B, L, 1)  query-axis mask

    enc_output = src_emb
    if needpos:
        enc_output = enc_output + pos_table[src_pos]   # frozen embedding lookup

    out = encoder_stack_pallas(
        enc_output, keep_row, non_pad, stacked_params,
        n_head=n_head, d_k=d_k, d_v=d_v)
    return (out,)


# ----------------------------------------------------------------------------
# Deterministic parameter init (shapes follow the PyTorch module __init__).
# Matmul weights are stored in bf16 (MXU-native); biases / LN params in f32.
# ----------------------------------------------------------------------------
def init_layer_params(key, d_model, d_inner, n_head, d_k, d_v):
    ks = jax.random.split(key, 6)
    s = 0.02
    fc_w = (s * jax.random.normal(ks[3], (n_head * d_v, d_model), jnp.float32))
    return {
        "w_qs": (s * jax.random.normal(ks[0], (d_model, n_head * d_k))).astype(jnp.bfloat16),
        "b_qs": jnp.zeros((1, n_head * d_k), jnp.float32),
        "w_ks": (s * jax.random.normal(ks[1], (d_model, n_head * d_k))).astype(jnp.bfloat16),
        "b_ks": jnp.zeros((1, n_head * d_k), jnp.float32),
        "w_vs": (s * jax.random.normal(ks[2], (d_model, n_head * d_v))).astype(jnp.bfloat16),
        "b_vs": jnp.zeros((1, n_head * d_v), jnp.float32),
        # fc folded per head: (n_head, d_v, d_model); rows h*d_v:(h+1)*d_v == head h
        "fc_w": fc_w.reshape(n_head, d_v, d_model).astype(jnp.bfloat16),
        "fc_b": jnp.zeros((1, d_model), jnp.float32),
        "ln1_g": jnp.ones((1, d_model), jnp.float32),
        "ln1_b": jnp.zeros((1, d_model), jnp.float32),
        "w1": (s * jax.random.normal(ks[4], (d_model, d_inner))).astype(jnp.bfloat16),
        "b1": jnp.zeros((1, d_inner), jnp.float32),
        "w2": (s * jax.random.normal(ks[5], (d_inner, d_model))).astype(jnp.bfloat16),
        "b2": jnp.zeros((1, d_model), jnp.float32),
        "ln2_g": jnp.ones((1, d_model), jnp.float32),
        "ln2_b": jnp.zeros((1, d_model), jnp.float32),
    }


def stack_layer_params(layer_params):
    """Stack per-layer dicts along a leading n_layers axis (layer grid axis)."""
    return {k: jnp.stack([p[k] for p in layer_params], axis=0)
            for k in layer_params[0]}


if __name__ == "__main__":
    # Module hyper-params (small, consistent with Encoder_high __init__).
    len_max_seq = 8
    d_word_vec = d_model = 32
    n_layers = 2
    n_head = 2
    d_k = d_v = 16
    d_inner = 64
    B, L = 2, len_max_seq

    key = jax.random.PRNGKey(0)
    k_emb, k_layers = jax.random.split(key)

    src_emb = jax.random.normal(k_emb, (B, L, d_word_vec), jnp.float32)
    # positions: 1..L (0 == PAD); second batch element has two padded slots.
    src_pos = jnp.stack([
        jnp.arange(1, L + 1, dtype=jnp.int32),
        jnp.where(jnp.arange(L) < L - 2, jnp.arange(1, L + 1), 0).astype(jnp.int32),
    ])

    pos_table = get_sinusoid_encoding_table(len_max_seq + 1, d_word_vec, padding_idx=0)
    layer_params = [
        init_layer_params(k, d_model, d_inner, n_head, d_k, d_v)
        for k in jax.random.split(k_layers, n_layers)
    ]
    stacked_params = stack_layer_params(layer_params)

    (enc_out,) = encoder_high_forward(
        src_emb, src_pos, stacked_params, pos_table,
        n_head=n_head, d_k=d_k, d_v=d_v, needpos=True)
    enc_out = jax.block_until_ready(enc_out)

    assert enc_out.shape == (B, L, d_model)
    assert bool(jnp.all(jnp.isfinite(enc_out)))
    # pad query rows must be zeroed by the non-pad mask
    assert bool(jnp.all(enc_out[1, -2:, :] == 0.0))
    print("KERNEL_OK")
</pallas_src>

<mosaic_0001>
module attributes {stable_mosaic.version = 11 : i64} {
  func.func @encoder_stack_kernel(%arg0: i32, %arg1: i32, %arg2: memref<1x8x32xf32, #tpu.memory_space<vmem>>, %arg3: memref<1x1x8xf32, #tpu.memory_space<vmem>>, %arg4: memref<1x8x1xf32, #tpu.memory_space<vmem>>, %arg5: memref<1x32x32xbf16, #tpu.memory_space<vmem>>, %arg6: memref<1x1x32xf32, #tpu.memory_space<vmem>>, %arg7: memref<1x32x32xbf16, #tpu.memory_space<vmem>>, %arg8: memref<1x1x32xf32, #tpu.memory_space<vmem>>, %arg9: memref<1x32x32xbf16, #tpu.memory_space<vmem>>, %arg10: memref<1x1x32xf32, #tpu.memory_space<vmem>>, %arg11: memref<1x2x16x32xbf16, #tpu.memory_space<vmem>>, %arg12: memref<1x1x32xf32, #tpu.memory_space<vmem>>, %arg13: memref<1x1x32xf32, #tpu.memory_space<vmem>>, %arg14: memref<1x1x32xf32, #tpu.memory_space<vmem>>, %arg15: memref<1x32x64xbf16, #tpu.memory_space<vmem>>, %arg16: memref<1x1x64xf32, #tpu.memory_space<vmem>>, %arg17: memref<1x64x32xbf16, #tpu.memory_space<vmem>>, %arg18: memref<1x1x32xf32, #tpu.memory_space<vmem>>, %arg19: memref<1x1x32xf32, #tpu.memory_space<vmem>>, %arg20: memref<1x1x32xf32, #tpu.memory_space<vmem>>, %arg21: memref<1x8x32xf32, #tpu.memory_space<vmem>>, %arg22: memref<8x32xf32, #tpu.memory_space<vmem>>) attributes {dimension_semantics = [#tpu.dimension_semantics<parallel>, #tpu.dimension_semantics<arbitrary>], iteration_bounds = array<i64: 2, 2>, scalar_prefetch = 0 : i64, scratch_operands = 1 : i64, tpu.core_type = #tpu.core_type<tc>, window_params = [{transform_indices = @transform_0, window_bounds = array<i64: 1, 8, 32>}, {transform_indices = @transform_1, window_bounds = array<i64: 1, 1, 8>}, {transform_indices = @transform_2, window_bounds = array<i64: 1, 8, 1>}, {transform_indices = @transform_3, window_bounds = array<i64: 1, 32, 32>}, {transform_indices = @transform_4, window_bounds = array<i64: 1, 1, 32>}, {transform_indices = @transform_5, window_bounds = array<i64: 1, 32, 32>}, {transform_indices = @transform_6, window_bounds = array<i64: 1, 1, 32>}, {transform_indices = @transform_7, window_bounds = array<i64: 1, 32, 32>}, {transform_indices = @transform_8, window_bounds = array<i64: 1, 1, 32>}, {transform_indices = @transform_9, window_bounds = array<i64: 1, 2, 16, 32>}, {transform_indices = @transform_10, window_bounds = array<i64: 1, 1, 32>}, {transform_indices = @transform_11, window_bounds = array<i64: 1, 1, 32>}, {transform_indices = @transform_12, window_bounds = array<i64: 1, 1, 32>}, {transform_indices = @transform_13, window_bounds = array<i64: 1, 32, 64>}, {transform_indices = @transform_14, window_bounds = array<i64: 1, 1, 64>}, {transform_indices = @transform_15, window_bounds = array<i64: 1, 64, 32>}, {transform_indices = @transform_16, window_bounds = array<i64: 1, 1, 32>}, {transform_indices = @transform_17, window_bounds = array<i64: 1, 1, 32>}, {transform_indices = @transform_18, window_bounds = array<i64: 1, 1, 32>}, {transform_indices = @transform_19, window_bounds = array<i64: 1, 8, 32>}]} {
    %c0_i32 = arith.constant 0 : i32
    %0 = arith.cmpi eq, %arg1, %c0_i32 : i32
    %1 = arith.extui %0 : i1 to i32
    %c0_i32_0 = arith.constant 0 : i32
    %2 = arith.cmpi ne, %1, %c0_i32_0 : i32
    scf.if %2 {
      %c0_90 = arith.constant 0 : index
      %c0_91 = arith.constant 0 : index
      %c0_92 = arith.constant 0 : index
      %174 = vector.load %arg2[%c0_90, %c0_91, %c0_92] : memref<1x8x32xf32, #tpu.memory_space<vmem>>, vector<1x8x32xf32>
      %175 = vector.shape_cast %174 : vector<1x8x32xf32> to vector<8x32xf32>
      %c0_93 = arith.constant 0 : index
      %c0_94 = arith.constant 0 : index
      %176 = vector.load %arg22[%c0_93, %c0_94] : memref<8x32xf32, #tpu.memory_space<vmem>>, vector<8x32xf32>
      tpu.vector_store %arg22[%c0_93, %c0_94], %175 {strides = array<i32>} : memref<8x32xf32, #tpu.memory_space<vmem>>, vector<8x32xf32>,
    } else {
    }
    %c0 = arith.constant 0 : index
    %c0_1 = arith.constant 0 : index
    %3 = vector.load %arg22[%c0, %c0_1] : memref<8x32xf32, #tpu.memory_space<vmem>>, vector<8x32xf32>
    %c0_2 = arith.constant 0 : index
    %c0_3 = arith.constant 0 : index
    %c0_4 = arith.constant 0 : index
    %4 = vector.load %arg3[%c0_2, %c0_3, %c0_4] : memref<1x1x8xf32, #tpu.memory_space<vmem>>, vector<1x1x8xf32>
    %5 = vector.shape_cast %4 : vector<1x1x8xf32> to vector<1x8xf32>
    %c0_5 = arith.constant 0 : index
    %c0_6 = arith.constant 0 : index
    %c0_7 = arith.constant 0 : index
    %6 = vector.load %arg4[%c0_5, %c0_6, %c0_7] : memref<1x8x1xf32, #tpu.memory_space<vmem>>, vector<1x8x1xf32>
    %7 = vector.shape_cast %6 : vector<1x8x1xf32> to vector<8x1xf32>
    %8 = arith.truncf %3 : vector<8x32xf32> to vector<8x32xbf16>
    %c0_8 = arith.constant 0 : index
    %c0_9 = arith.constant 0 : index
    %c0_10 = arith.constant 0 : index
    %9 = vector.load %arg5[%c0_8, %c0_9, %c0_10] : memref<1x32x32xbf16, #tpu.memory_space<vmem>>, vector<1x32x32xbf16>
    %10 = vector.shape_cast %9 : vector<1x32x32xbf16> to vector<32x32xbf16>
    %cst = arith.constant dense<0.000000e+00> : vector<8x32xf32>
    %11 = tpu.matmul %8, %10, %cst {dimension_numbers = #tpu.dot_dimension_numbers<[1], [0], [0], [1], [0, 0, 1, 1], [], []>} : vector<8x32xbf16>, vector<32x32xbf16>, vector<8x32xf32> -> vector<8x32xf32>
    %c0_11 = arith.constant 0 : index
    %c0_12 = arith.constant 0 : index
    %c0_13 = arith.constant 0 : index
    %12 = vector.load %arg6[%c0_11, %c0_12, %c0_13] : memref<1x1x32xf32, #tpu.memory_space<vmem>>, vector<1x1x32xf32>
    %13 = vector.shape_cast %12 : vector<1x1x32xf32> to vector<1x32xf32>
    %14 = vector.broadcast %13 : vector<1x32xf32> to vector<8x32xf32>
    %15 = arith.addf %11, %14 : vector<8x32xf32>
    %c0_14 = arith.constant 0 : index
    %c0_15 = arith.constant 0 : index
    %c0_16 = arith.constant 0 : index
    %16 = vector.load %arg7[%c0_14, %c0_15, %c0_16] : memref<1x32x32xbf16, #tpu.memory_space<vmem>>, vector<1x32x32xbf16>
    %17 = vector.shape_cast %16 : vector<1x32x32xbf16> to vector<32x32xbf16>
    %cst_17 = arith.constant dense<0.000000e+00> : vector<8x32xf32>
    %18 = tpu.matmul %8, %17, %cst_17 {dimension_numbers = #tpu.dot_dimension_numbers<[1], [0], [0], [1], [0, 0, 1, 1], [], []>} : vector<8x32xbf16>, vector<32x32xbf16>, vector<8x32xf32> -> vector<8x32xf32>
    %c0_18 = arith.constant 0 : index
    %c0_19 = arith.constant 0 : index
    %c0_20 = arith.constant 0 : index
    %19 = vector.load %arg8[%c0_18, %c0_19, %c0_20] : memref<1x1x32xf32, #tpu.memory_space<vmem>>, vector<1x1x32xf32>
    %20 = vector.shape_cast %19 : vector<1x1x32xf32> to vector<1x32xf32>
    %21 = vector.broadcast %20 : vector<1x32xf32> to vector<8x32xf32>
    %22 = arith.addf %18, %21 : vector<8x32xf32>
    %c0_21 = arith.constant 0 : index
    %c0_22 = arith.constant 0 : index
    %c0_23 = arith.constant 0 : index
    %23 = vector.load %arg9[%c0_21, %c0_22, %c0_23] : memref<1x32x32xbf16, #tpu.memory_space<vmem>>, vector<1x32x32xbf16>
    %24 = vector.shape_cast %23 : vector<1x32x32xbf16> to vector<32x32xbf16>
    %cst_24 = arith.constant dense<0.000000e+00> : vector<8x32xf32>
    %25 = tpu.matmul %8, %24, %cst_24 {dimension_numbers = #tpu.dot_dimension_numbers<[1], [0], [0], [1], [0, 0, 1, 1], [], []>} : vector<8x32xbf16>, vector<32x32xbf16>, vector<8x32xf32> -> vector<8x32xf32>
    %c0_25 = arith.constant 0 : index
    %c0_26 = arith.constant 0 : index
    %c0_27 = arith.constant 0 : index
    %26 = vector.load %arg10[%c0_25, %c0_26, %c0_27] : memref<1x1x32xf32, #tpu.memory_space<vmem>>, vector<1x1x32xf32>
    %27 = vector.shape_cast %26 : vector<1x1x32xf32> to vector<1x32xf32>
    %28 = vector.broadcast %27 : vector<1x32xf32> to vector<8x32xf32>
    %29 = arith.addf %25, %28 : vector<8x32xf32>
    %cst_28 = arith.constant 2.500000e-01 : f32
    %30 = vector.broadcast %cst_28 : f32 to vector<8x32xf32>
    %31 = arith.mulf %15, %30 : vector<8x32xf32>
    %32 = arith.truncf %31 : vector<8x32xf32> to vector<8x32xbf16>
    %33 = arith.truncf %22 : vector<8x32xf32> to vector<8x32xbf16>
    %34 = arith.truncf %29 : vector<8x32xf32> to vector<8x32xbf16>
    %c0_29 = arith.constant 0 : index
    %c0_30 = arith.constant 0 : index
    %c0_31 = arith.constant 0 : index
    %c0_32 = arith.constant 0 : index
    %35 = vector.load %arg11[%c0_29, %c0_30, %c0_31, %c0_32] : memref<1x2x16x32xbf16, #tpu.memory_space<vmem>>, vector<1x2x16x32xbf16>
    %36 = vector.shape_cast %35 : vector<1x2x16x32xbf16> to vector<2x16x32xbf16>
    %37 = vector.extract_strided_slice %32 {offsets = [0, 0], sizes = [8, 16], strides = [1, 1]} : vector<8x32xbf16> to vector<8x16xbf16>
    %38 = vector.extract_strided_slice %33 {offsets = [0, 0], sizes = [8, 16], strides = [1, 1]} : vector<8x32xbf16> to vector<8x16xbf16>
    %39 = vector.extract_strided_slice %34 {offsets = [0, 0], sizes = [8, 16], strides = [1, 1]} : vector<8x32xbf16> to vector<8x16xbf16>
    %cst_33 = arith.constant dense<0.000000e+00> : vector<8x8xf32>
    %40 = tpu.matmul %37, %38, %cst_33 {dimension_numbers = #tpu.dot_dimension_numbers<[1], [1], [0], [0], [0, 0, 1, 0], [], []>} : vector<8x16xbf16>, vector<8x16xbf16>, vector<8x8xf32> -> vector<8x8xf32>
    %cst_34 = arith.constant 0.000000e+00 : f32
    %41 = vector.broadcast %cst_34 : f32 to vector<1x8xf32>
    %42 = arith.cmpf ogt, %5, %41 : vector<1x8xf32>
    %cst_35 = arith.constant -1.000000e+30 : f32
    %43 = vector.shape_cast %42 : vector<1x8xi1> to vector<1x8xi1>
    %44 = vector.broadcast %43 : vector<1x8xi1> to vector<8x8xi1>
    %45 = vector.broadcast %cst_35 : f32 to vector<8x8xf32>
    %46 = arith.select %44, %40, %45 : vector<8x8xi1>, vector<8x8xf32>
    %cst_36 = arith.constant dense<0xFF800000> : vector<8xf32>
    %47 = vector.multi_reduction <maximumf>, %46, %cst_36 [1] : vector<8x8xf32> to vector<8xf32>
    %48 = vector.shape_cast %47 : vector<8xf32> to vector<8x1xf32>
    %49 = vector.broadcast %48 : vector<8x1xf32> to vector<8x8xf32>
    %50 = arith.subf %46, %49 : vector<8x8xf32>
    %51 = math.exp %50 : vector<8x8xf32>
    %cst_37 = arith.constant dense<0.000000e+00> : vector<8xf32>
    %52 = vector.multi_reduction <add>, %51, %cst_37 [1] : vector<8x8xf32> to vector<8xf32>
    %53 = vector.shape_cast %52 : vector<8xf32> to vector<8x1xf32>
    %54 = tpu.reciprocal %53 {approx = true} : vector<8x1xf32> -> vector<8x1xf32>
    %55 = vector.broadcast %54 : vector<8x1xf32> to vector<8x8xf32>
    %56 = arith.mulf %51, %55 : vector<8x8xf32>
    %57 = arith.truncf %56 : vector<8x8xf32> to vector<8x8xbf16>
    %cst_38 = arith.constant dense<0.000000e+00> : vector<8x16xf32>
    %58 = tpu.matmul %57, %39, %cst_38 {dimension_numbers = #tpu.dot_dimension_numbers<[1], [0], [0], [1], [0, 0, 1, 1], [], []>} : vector<8x8xbf16>, vector<8x16xbf16>, vector<8x16xf32> -> vector<8x16xf32>
    %59 = arith.truncf %58 : vector<8x16xf32> to vector<8x16xbf16>
    %60 = vector.extract_strided_slice %36 {offsets = [0, 0, 0], sizes = [1, 16, 32], strides = [1, 1, 1]} : vector<2x16x32xbf16> to vector<1x16x32xbf16>
    %61 = vector.shape_cast %60 : vector<1x16x32xbf16> to vector<16x32xbf16>
    %cst_39 = arith.constant dense<0.000000e+00> : vector<8x32xf32>
    %62 = tpu.matmul %59, %61, %cst_39 {dimension_numbers = #tpu.dot_dimension_numbers<[1], [0], [0], [1], [0, 0, 1, 1], [], []>} : vector<8x16xbf16>, vector<16x32xbf16>, vector<8x32xf32> -> vector<8x32xf32>
    %63 = vector.extract_strided_slice %32 {offsets = [0, 16], sizes = [8, 16], strides = [1, 1]} : vector<8x32xbf16> to vector<8x16xbf16>
    %64 = vector.extract_strided_slice %33 {offsets = [0, 16], sizes = [8, 16], strides = [1, 1]} : vector<8x32xbf16> to vector<8x16xbf16>
    %65 = vector.extract_strided_slice %34 {offsets = [0, 16], sizes = [8, 16], strides = [1, 1]} : vector<8x32xbf16> to vector<8x16xbf16>
    %cst_40 = arith.constant dense<0.000000e+00> : vector<8x8xf32>
    %66 = tpu.matmul %63, %64, %cst_40 {dimension_numbers = #tpu.dot_dimension_numbers<[1], [1], [0], [0], [0, 0, 1, 0], [], []>} : vector<8x16xbf16>, vector<8x16xbf16>, vector<8x8xf32> -> vector<8x8xf32>
    %cst_41 = arith.constant 0.000000e+00 : f32
    %67 = vector.broadcast %cst_41 : f32 to vector<1x8xf32>
    %68 = arith.cmpf ogt, %5, %67 : vector<1x8xf32>
    %cst_42 = arith.constant -1.000000e+30 : f32
    %69 = vector.shape_cast %68 : vector<1x8xi1> to vector<1x8xi1>
    %70 = vector.broadcast %69 : vector<1x8xi1> to vector<8x8xi1>
    %71 = vector.broadcast %cst_42 : f32 to vector<8x8xf32>
    %72 = arith.select %70, %66, %71 : vector<8x8xi1>, vector<8x8xf32>
    %cst_43 = arith.constant dense<0xFF800000> : vector<8xf32>
    %73 = vector.multi_reduction <maximumf>, %72, %cst_43 [1] : vector<8x8xf32> to vector<8xf32>
    %74 = vector.shape_cast %73 : vector<8xf32> to vector<8x1xf32>
    %75 = vector.broadcast %74 : vector<8x1xf32> to vector<8x8xf32>
    %76 = arith.subf %72, %75 : vector<8x8xf32>
    %77 = math.exp %76 : vector<8x8xf32>
    %cst_44 = arith.constant dense<0.000000e+00> : vector<8xf32>
    %78 = vector.multi_reduction <add>, %77, %cst_44 [1] : vector<8x8xf32> to vector<8xf32>
    %79 = vector.shape_cast %78 : vector<8xf32> to vector<8x1xf32>
    %80 = tpu.reciprocal %79 {approx = true} : vector<8x1xf32> -> vector<8x1xf32>
    %81 = vector.broadcast %80 : vector<8x1xf32> to vector<8x8xf32>
    %82 = arith.mulf %77, %81 : vector<8x8xf32>
    %83 = arith.truncf %82 : vector<8x8xf32> to vector<8x8xbf16>
    %cst_45 = arith.constant dense<0.000000e+00> : vector<8x16xf32>
    %84 = tpu.matmul %83, %65, %cst_45 {dimension_numbers = #tpu.dot_dimension_numbers<[1], [0], [0], [1], [0, 0, 1, 1], [], []>} : vector<8x8xbf16>, vector<8x16xbf16>, vector<8x16xf32> -> vector<8x16xf32>
    %85 = arith.truncf %84 : vector<8x16xf32> to vector<8x16xbf16>
    %86 = vector.extract_strided_slice %36 {offsets = [1, 0, 0], sizes = [1, 16, 32], strides = [1, 1, 1]} : vector<2x16x32xbf16> to vector<1x16x32xbf16>
    %87 = vector.shape_cast %86 : vector<1x16x32xbf16> to vector<16x32xbf16>
    %cst_46 = arith.constant dense<0.000000e+00> : vector<8x32xf32>
    %88 = tpu.matmul %85, %87, %cst_46 {dimension_numbers = #tpu.dot_dimension_numbers<[1], [0], [0], [1], [0, 0, 1, 1], [], []>} : vector<8x16xbf16>, vector<16x32xbf16>, vector<8x32xf32> -> vector<8x32xf32>
    %89 = arith.addf %62, %88 : vector<8x32xf32>
    %c0_47 = arith.constant 0 : index
    %c0_48 = arith.constant 0 : index
    %c0_49 = arith.constant 0 : index
    %90 = vector.load %arg12[%c0_47, %c0_48, %c0_49] : memref<1x1x32xf32, #tpu.memory_space<vmem>>, vector<1x1x32xf32>
    %91 = vector.shape_cast %90 : vector<1x1x32xf32> to vector<1x32xf32>
    %92 = vector.broadcast %91 : vector<1x32xf32> to vector<8x32xf32>
    %93 = arith.addf %89, %92 : vector<8x32xf32>
    %94 = arith.addf %93, %3 : vector<8x32xf32>
    %c0_50 = arith.constant 0 : index
    %c0_51 = arith.constant 0 : index
    %c0_52 = arith.constant 0 : index
    %95 = vector.load %arg13[%c0_50, %c0_51, %c0_52] : memref<1x1x32xf32, #tpu.memory_space<vmem>>, vector<1x1x32xf32>
    %96 = vector.shape_cast %95 : vector<1x1x32xf32> to vector<1x32xf32>
    %c0_53 = arith.constant 0 : index
    %c0_54 = arith.constant 0 : index
    %c0_55 = arith.constant 0 : index
    %97 = vector.load %arg14[%c0_53, %c0_54, %c0_55] : memref<1x1x32xf32, #tpu.memory_space<vmem>>, vector<1x1x32xf32>
    %98 = vector.shape_cast %97 : vector<1x1x32xf32> to vector<1x32xf32>
    %cst_56 = arith.constant dense<0.000000e+00> : vector<8xf32>
    %99 = vector.multi_reduction <add>, %94, %cst_56 [1] : vector<8x32xf32> to vector<8xf32>
    %100 = vector.shape_cast %99 : vector<8xf32> to vector<8x1xf32>
    %cst_57 = arith.constant 3.200000e+01 : f32
    %101 = vector.broadcast %cst_57 : f32 to vector<8x1xf32>
    %102 = arith.divf %100, %101 : vector<8x1xf32>
    %103 = vector.broadcast %102 : vector<8x1xf32> to vector<8x32xf32>
    %104 = arith.subf %94, %103 : vector<8x32xf32>
    %105 = arith.mulf %104, %104 : vector<8x32xf32>
    %cst_58 = arith.constant dense<0.000000e+00> : vector<8xf32>
    %106 = vector.multi_reduction <add>, %105, %cst_58 [1] : vector<8x32xf32> to vector<8xf32>
    %107 = vector.shape_cast %106 : vector<8xf32> to vector<8x1xf32>
    %cst_59 = arith.constant 3.200000e+01 : f32
    %108 = vector.broadcast %cst_59 : f32 to vector<8x1xf32>
    %109 = arith.divf %107, %108 : vector<8x1xf32>
    %110 = vector.broadcast %102 : vector<8x1xf32> to vector<8x32xf32>
    %111 = arith.subf %94, %110 : vector<8x32xf32>
    %cst_60 = arith.constant 9.99999974E-6 : f32
    %112 = vector.broadcast %cst_60 : f32 to vector<8x1xf32>
    %113 = arith.addf %109, %112 : vector<8x1xf32>
    %114 = math.rsqrt %113 : vector<8x1xf32>
    %115 = vector.broadcast %114 : vector<8x1xf32> to vector<8x32xf32>
    %116 = arith.mulf %111, %115 : vector<8x32xf32>
    %117 = vector.broadcast %96 : vector<1x32xf32> to vector<8x32xf32>
    %118 = arith.mulf %116, %117 : vector<8x32xf32>
    %119 = vector.broadcast %98 : vector<1x32xf32> to vector<8x32xf32>
    %120 = arith.addf %118, %119 : vector<8x32xf32>
    %121 = vector.broadcast %7 : vector<8x1xf32> to vector<8x32xf32>
    %122 = arith.mulf %120, %121 : vector<8x32xf32>
    %123 = arith.truncf %122 : vector<8x32xf32> to vector<8x32xbf16>
    %c0_61 = arith.constant 0 : index
    %c0_62 = arith.constant 0 : index
    %c0_63 = arith.constant 0 : index
    %124 = vector.load %arg15[%c0_61, %c0_62, %c0_63] : memref<1x32x64xbf16, #tpu.memory_space<vmem>>, vector<1x32x64xbf16>
    %125 = vector.shape_cast %124 : vector<1x32x64xbf16> to vector<32x64xbf16>
    %cst_64 = arith.constant dense<0.000000e+00> : vector<8x64xf32>
    %126 = tpu.matmul %123, %125, %cst_64 {dimension_numbers = #tpu.dot_dimension_numbers<[1], [0], [0], [1], [0, 0, 1, 1], [], []>} : vector<8x32xbf16>, vector<32x64xbf16>, vector<8x64xf32> -> vector<8x64xf32>
    %c0_65 = arith.constant 0 : index
    %c0_66 = arith.constant 0 : index
    %c0_67 = arith.constant 0 : index
    %127 = vector.load %arg16[%c0_65, %c0_66, %c0_67] : memref<1x1x64xf32, #tpu.memory_space<vmem>>, vector<1x1x64xf32>
    %128 = vector.shape_cast %127 : vector<1x1x64xf32> to vector<1x64xf32>
    %129 = vector.broadcast %128 : vector<1x64xf32> to vector<8x64xf32>
    %130 = arith.addf %126, %129 : vector<8x64xf32>
    %cst_68 = arith.constant 0.000000e+00 : f32
    %131 = vector.broadcast %cst_68 : f32 to vector<8x64xf32>
    %132 = arith.maximumf %130, %131 : vector<8x64xf32>
    %133 = arith.truncf %132 : vector<8x64xf32> to vector<8x64xbf16>
    %c0_69 = arith.constant 0 : index
    %c0_70 = arith.constant 0 : index
    %c0_71 = arith.constant 0 : index
    %134 = vector.load %arg17[%c0_69, %c0_70, %c0_71] : memref<1x64x32xbf16, #tpu.memory_space<vmem>>, vector<1x64x32xbf16>
    %135 = vector.shape_cast %134 : vector<1x64x32xbf16> to vector<64x32xbf16>
    %cst_72 = arith.constant dense<0.000000e+00> : vector<8x32xf32>
    %136 = tpu.matmul %133, %135, %cst_72 {dimension_numbers = #tpu.dot_dimension_numbers<[1], [0], [0], [1], [0, 0, 1, 1], [], []>} : vector<8x64xbf16>, vector<64x32xbf16>, vector<8x32xf32> -> vector<8x32xf32>
    %c0_73 = arith.constant 0 : index
    %c0_74 = arith.constant 0 : index
    %c0_75 = arith.constant 0 : index
    %137 = vector.load %arg18[%c0_73, %c0_74, %c0_75] : memref<1x1x32xf32, #tpu.memory_space<vmem>>, vector<1x1x32xf32>
    %138 = vector.shape_cast %137 : vector<1x1x32xf32> to vector<1x32xf32>
    %139 = vector.broadcast %138 : vector<1x32xf32> to vector<8x32xf32>
    %140 = arith.addf %136, %139 : vector<8x32xf32>
    %141 = arith.addf %140, %122 : vector<8x32xf32>
    %c0_76 = arith.constant 0 : index
    %c0_77 = arith.constant 0 : index
    %c0_78 = arith.constant 0 : index
    %142 = vector.load %arg19[%c0_76, %c0_77, %c0_78] : memref<1x1x32xf32, #tpu.memory_space<vmem>>, vector<1x1x32xf32>
    %143 = vector.shape_cast %142 : vector<1x1x32xf32> to vector<1x32xf32>
    %c0_79 = arith.constant 0 : index
    %c0_80 = arith.constant 0 : index
    %c0_81 = arith.constant 0 : index
    %144 = vector.load %arg20[%c0_79, %c0_80, %c0_81] : memref<1x1x32xf32, #tpu.memory_space<vmem>>, vector<1x1x32xf32>
    %145 = vector.shape_cast %144 : vector<1x1x32xf32> to vector<1x32xf32>
    %cst_82 = arith.constant dense<0.000000e+00> : vector<8xf32>
    %146 = vector.multi_reduction <add>, %141, %cst_82 [1] : vector<8x32xf32> to vector<8xf32>
    %147 = vector.shape_cast %146 : vector<8xf32> to vector<8x1xf32>
    %cst_83 = arith.constant 3.200000e+01 : f32
    %148 = vector.broadcast %cst_83 : f32 to vector<8x1xf32>
    %149 = arith.divf %147, %148 : vector<8x1xf32>
    %150 = vector.broadcast %149 : vector<8x1xf32> to vector<8x32xf32>
    %151 = arith.subf %141, %150 : vector<8x32xf32>
    %152 = arith.mulf %151, %151 : vector<8x32xf32>
    %cst_84 = arith.constant dense<0.000000e+00> : vector<8xf32>
    %153 = vector.multi_reduction <add>, %152, %cst_84 [1] : vector<8x32xf32> to vector<8xf32>
    %154 = vector.shape_cast %153 : vector<8xf32> to vector<8x1xf32>
    %cst_85 = arith.constant 3.200000e+01 : f32
    %155 = vector.broadcast %cst_85 : f32 to vector<8x1xf32>
    %156 = arith.divf %154, %155 : vector<8x1xf32>
    %157 = vector.broadcast %149 : vector<8x1xf32> to vector<8x32xf32>
    %158 = arith.subf %141, %157 : vector<8x32xf32>
    %cst_86 = arith.constant 9.99999974E-6 : f32
    %159 = vector.broadcast %cst_86 : f32 to vector<8x1xf32>
    %160 = arith.addf %156, %159 : vector<8x1xf32>
    %161 = math.rsqrt %160 : vector<8x1xf32>
    %162 = vector.broadcast %161 : vector<8x1xf32> to vector<8x32xf32>
    %163 = arith.mulf %158, %162 : vector<8x32xf32>
    %164 = vector.broadcast %143 : vector<1x32xf32> to vector<8x32xf32>
    %165 = arith.mulf %163, %164 : vector<8x32xf32>
    %166 = vector.broadcast %145 : vector<1x32xf32> to vector<8x32xf32>
    %167 = arith.addf %165, %166 : vector<8x32xf32>
    %168 = vector.broadcast %7 : vector<8x1xf32> to vector<8x32xf32>
    %169 = arith.mulf %167, %168 : vector<8x32xf32>
    %c0_87 = arith.constant 0 : index
    %c0_88 = arith.constant 0 : index
    %170 = vector.load %arg22[%c0_87, %c0_88] : memref<8x32xf32, #tpu.memory_space<vmem>>, vector<8x32xf32>
    tpu.vector_store %arg22[%c0_87, %c0_88], %169 {strides = array<i32>} : memref<8x32xf32, #tpu.memory_space<vmem>>, vector<8x32xf32>,
    %c1_i32 = arith.constant 1 : i32
    %171 = arith.cmpi eq, %arg1, %c1_i32 : i32
    %172 = arith.extui %171 : i1 to i32
    %c0_i32_89 = arith.constant 0 : i32
    %173 = arith.cmpi ne, %172, %c0_i32_89 : i32
    scf.if %173 {
      %c0_90 = arith.constant 0 : index
      %c0_91 = arith.constant 0 : index
      %c0_92 = arith.constant 0 : index
      %174 = vector.load %arg21[%c0_90, %c0_91, %c0_92] : memref<1x8x32xf32, #tpu.memory_space<vmem>>, vector<1x8x32xf32>
      %175 = vector.shape_cast %174 : vector<1x8x32xf32> to vector<8x32xf32>
      %176 = vector.shape_cast %169 : vector<8x32xf32> to vector<1x8x32xf32>
      tpu.vector_store %arg21[%c0_90, %c0_91, %c0_92], %176 {strides = array<i32>} : memref<1x8x32xf32, #tpu.memory_space<vmem>>, vector<1x8x32xf32>,
    } else {
    }
    return
  }
  func.func @transform_0(%arg0: i32, %arg1: i32) -> (i32, i32, i32) {
    %c0_i32 = arith.constant 0 : i32
    %c0_i32_0 = arith.constant 0 : i32
    %c0_i32_1 = arith.constant 0 : i32
    return %arg0, %c0_i32, %c0_i32_0 : i32, i32, i32
  }
  func.func @transform_1(%arg0: i32, %arg1: i32) -> (i32, i32, i32) {
    %c0_i32 = arith.constant 0 : i32
    %c0_i32_0 = arith.constant 0 : i32
    %c0_i32_1 = arith.constant 0 : i32
    return %arg0, %c0_i32, %c0_i32_0 : i32, i32, i32
  }
  func.func @transform_2(%arg0: i32, %arg1: i32) -> (i32, i32, i32) {
    %c0_i32 = arith.constant 0 : i32
    %c0_i32_0 = arith.constant 0 : i32
    %c0_i32_1 = arith.constant 0 : i32
    return %arg0, %c0_i32, %c0_i32_0 : i32, i32, i32
  }
  func.func @transform_3(%arg0: i32, %arg1: i32) -> (i32, i32, i32) {
    %c0_i32 = arith.constant 0 : i32
    %c0_i32_0 = arith.constant 0 : i32
    %c0_i32_1 = arith.constant 0 : i32
    return %arg1, %c0_i32, %c0_i32_0 : i32, i32, i32
  }
  func.func @transform_4(%arg0: i32, %arg1: i32) -> (i32, i32, i32) {
    %c0_i32 = arith.constant 0 : i32
    %c0_i32_0 = arith.constant 0 : i32
    %c0_i32_1 = arith.constant 0 : i32
    return %arg1, %c0_i32, %c0_i32_0 : i32, i32, i32
  }
  func.func @transform_5(%arg0: i32, %arg1: i32) -> (i32, i32, i32) {
    %c0_i32 = arith.constant 0 : i32
    %c0_i32_0 = arith.constant 0 : i32
    %c0_i32_1 = arith.constant 0 : i32
    return %arg1, %c0_i32, %c0_i32_0 : i32, i32, i32
  }
  func.func @transform_6(%arg0: i32, %arg1: i32) -> (i32, i32, i32) {
    %c0_i32 = arith.constant 0 : i32
    %c0_i32_0 = arith.constant 0 : i32
    %c0_i32_1 = arith.constant 0 : i32
    return %arg1, %c0_i32, %c0_i32_0 : i32, i32, i32
  }
  func.func @transform_7(%arg0: i32, %arg1: i32) -> (i32, i32, i32) {
    %c0_i32 = arith.constant 0 : i32
    %c0_i32_0 = arith.constant 0 : i32
    %c0_i32_1 = arith.constant 0 : i32
    return %arg1, %c0_i32, %c0_i32_0 : i32, i32, i32
  }
  func.func @transform_8(%arg0: i32, %arg1: i32) -> (i32, i32, i32) {
    %c0_i32 = arith.constant 0 : i32
    %c0_i32_0 = arith.constant 0 : i32
    %c0_i32_1 = arith.constant 0 : i32
    return %arg1, %c0_i32, %c0_i32_0 : i32, i32, i32
  }
  func.func @transform_9(%arg0: i32, %arg1: i32) -> (i32, i32, i32, i32) {
    %c0_i32 = arith.constant 0 : i32
    %c0_i32_0 = arith.constant 0 : i32
    %c0_i32_1 = arith.constant 0 : i32
    %c0_i32_2 = arith.constant 0 : i32
    return %arg1, %c0_i32, %c0_i32_0, %c0_i32_1 : i32, i32, i32, i32
  }
  func.func @transform_10(%arg0: i32, %arg1: i32) -> (i32, i32, i32) {
    %c0_i32 = arith.constant 0 : i32
    %c0_i32_0 = arith.constant 0 : i32
    %c0_i32_1 = arith.constant 0 : i32
    return %arg1, %c0_i32, %c0_i32_0 : i32, i32, i32
  }
  func.func @transform_11(%arg0: i32, %arg1: i32) -> (i32, i32, i32) {
    %c0_i32 = arith.constant 0 : i32
    %c0_i32_0 = arith.constant 0 : i32
    %c0_i32_1 = arith.constant 0 : i32
    return %arg1, %c0_i32, %c0_i32_0 : i32, i32, i32
  }
  func.func @transform_12(%arg0: i32, %arg1: i32) -> (i32, i32, i32) {
    %c0_i32 = arith.constant 0 : i32
    %c0_i32_0 = arith.constant 0 : i32
    %c0_i32_1 = arith.constant 0 : i32
    return %arg1, %c0_i32, %c0_i32_0 : i32, i32, i32
  }
  func.func @transform_13(%arg0: i32, %arg1: i32) -> (i32, i32, i32) {
    %c0_i32 = arith.constant 0 : i32
    %c0_i32_0 = arith.constant 0 : i32
    %c0_i32_1 = arith.constant 0 : i32
    return %arg1, %c0_i32, %c0_i32_0 : i32, i32, i32
  }
  func.func @transform_14(%arg0: i32, %arg1: i32) -> (i32, i32, i32) {
    %c0_i32 = arith.constant 0 : i32
    %c0_i32_0 = arith.constant 0 : i32
    %c0_i32_1 = arith.constant 0 : i32
    return %arg1, %c0_i32, %c0_i32_0 : i32, i32, i32
  }
  func.func @transform_15(%arg0: i32, %arg1: i32) -> (i32, i32, i32) {
    %c0_i32 = arith.constant 0 : i32
    %c0_i32_0 = arith.constant 0 : i32
    %c0_i32_1 = arith.constant 0 : i32
    return %arg1, %c0_i32, %c0_i32_0 : i32, i32, i32
  }
  func.func @transform_16(%arg0: i32, %arg1: i32) -> (i32, i32, i32) {
    %c0_i32 = arith.constant 0 : i32
    %c0_i32_0 = arith.constant 0 : i32
    %c0_i32_1 = arith.constant 0 : i32
    return %arg1, %c0_i32, %c0_i32_0 : i32, i32, i32
  }
  func.func @transform_17(%arg0: i32, %arg1: i32) -> (i32, i32, i32) {
    %c0_i32 = arith.constant 0 : i32
    %c0_i32_0 = arith.constant 0 : i32
    %c0_i32_1 = arith.constant 0 : i32
    return %arg1, %c0_i32, %c0_i32_0 : i32, i32, i32
  }
  func.func @transform_18(%arg0: i32, %arg1: i32) -> (i32, i32, i32) {
    %c0_i32 = arith.constant 0 : i32
    %c0_i32_0 = arith.constant 0 : i32
    %c0_i32_1 = arith.constant 0 : i32
    return %arg1, %c0_i32, %c0_i32_0 : i32, i32, i32
  }
  func.func @transform_19(%arg0: i32, %arg1: i32) -> (i32, i32, i32) {
    %c0_i32 = arith.constant 0 : i32
    %c0_i32_0 = arith.constant 0 : i32
    %c0_i32_1 = arith.constant 0 : i32
    return %arg0, %c0_i32, %c0_i32_0 : i32, i32, i32
  }
}

</mosaic_0001>

<llo_original>
// kernel: tpu_custom_call.1
$region0: #{tpu_custom_call.1}
  #allocation0 [shape = 'u32[]', space=smem, size = 0x4, offset = 0x4, fixed_abs, tag = 'smem constant byte address 0x4 - core index']
  #allocation1 [shape = 'u32[72,128]{1,0:T(1,128)}', space=vmem, size = 0x9000, scoped, tag = 'internal scratch']
  #allocation2 [shape = 'f32[8,32]{1,0:T(8,128)}', space=vmem, size = 0x1000, scoped, tag = 'scratch operand']
  %s0 = inlined_call_operand.hbm [shape: f32[2,8,32], index: 0, kind: input, shape index: {}]
  %s1 = inlined_call_operand.hbm [shape: f32[2,1,8], index: 1, kind: input, shape index: {}]
  %s2 = inlined_call_operand.vmem [shape: f32[2,8,1], index: 2, kind: input, shape index: {}]
  %s3 = inlined_call_operand.vmem [shape: bf16[2,32,32], index: 3, kind: input, shape index: {}]
  %s4 = inlined_call_operand.hbm [shape: f32[2,1,32], index: 4, kind: input, shape index: {}]
  %s5 = inlined_call_operand.vmem [shape: bf16[2,32,32], index: 5, kind: input, shape index: {}]
  %s6 = inlined_call_operand.hbm [shape: f32[2,1,32], index: 6, kind: input, shape index: {}]
  %s7 = inlined_call_operand.vmem [shape: bf16[2,32,32], index: 7, kind: input, shape index: {}]
  %s8 = inlined_call_operand.hbm [shape: f32[2,1,32], index: 8, kind: input, shape index: {}]
  %s9 = inlined_call_operand.hbm [shape: bf16[2,2,16,32], index: 9, kind: input, shape index: {}]
  %s10 = inlined_call_operand.hbm [shape: f32[2,1,32], index: 10, kind: input, shape index: {}]
  %s11 = inlined_call_operand.hbm [shape: f32[2,1,32], index: 11, kind: input, shape index: {}]
  %s12 = inlined_call_operand.hbm [shape: f32[2,1,32], index: 12, kind: input, shape index: {}]
  %s13 = inlined_call_operand.hbm [shape: bf16[2,32,64], index: 13, kind: input, shape index: {}]
  %s14 = inlined_call_operand.hbm [shape: f32[2,1,64], index: 14, kind: input, shape index: {}]
  %s15 = inlined_call_operand.vmem [shape: bf16[2,64,32], index: 15, kind: input, shape index: {}]
  %s16 = inlined_call_operand.hbm [shape: f32[2,1,32], index: 16, kind: input, shape index: {}]
  %s17 = inlined_call_operand.hbm [shape: f32[2,1,32], index: 17, kind: input, shape index: {}]
  %s18 = inlined_call_operand.vmem [shape: f32[2,1,32], index: 18, kind: input, shape index: {}]
  %s19 = inlined_call_operand.hbm [shape: f32[2,8,32], index: 19, kind: output, shape index: {}]
  %s20 = sld [smem:[#allocation0]]
  $region169: #{tpu_custom_call.1} parent=0
    _
  %s22 = ssub.s32 1, %s20
  %s23 = scalar_select 0, %s22, %s20
  $region1: #{tpu_custom_call.1} parent=0
    #allocation3 [shape = 'u8[8192]{0}', space=vmem, size = 0x2000, scoped, tag = 'input window, operand 0']
    #allocation4 [shape = 's32[2]{0}', space=sflag, size = 0x8, scoped, tag = 'scoped memory for tpu_custom_call.1']
    #allocation5 [shape = 's32[2]{0}', space=sflag, size = 0x8, scoped, tag = 'scoped memory for tpu_custom_call.1']
    #allocation6 [shape = 'u8[1024]{0}', space=vmem, size = 0x400, scoped, tag = 'input window, operand 1']
    #allocation7 [shape = 's32[2]{0}', space=sflag, size = 0x8, scoped, tag = 'scoped memory for tpu_custom_call.1']
    #allocation8 [shape = 'u8[1024]{0}', space=vmem, size = 0x400, scoped, tag = 'input window, operand 4']
    #allocation9 [shape = 'u8[1024]{0}', space=vmem, size = 0x400, scoped, tag = 'input window, operand 6']
    #allocation10 [shape = 's32[2]{0}', space=sflag, size = 0x8, scoped, tag = 'scoped memory for tpu_custom_call.1']
    #allocation11 [shape = 'u8[1024]{0}', space=vmem, size = 0x400, scoped, tag = 'input window, operand 8']
    #allocation12 [shape = 'u8[16384]{0}', space=vmem, size = 0x4000, scoped, tag = 'input window, operand 9']
    #allocation13 [shape = 's32[2]{0}', space=sflag, size = 0x8, scoped, tag = 'scoped memory for tpu_custom_call.1']
    #allocation14 [shape = 'u8[1024]{0}', space=vmem, size = 0x400, scoped, tag = 'input window, operand 10']
    #allocation15 [shape = 'u8[1024]{0}', space=vmem, size = 0x400, scoped, tag = 'input window, operand 11']
    #allocation16 [shape = 's32[2]{0}', space=sflag, size = 0x8, scoped, tag = 'scoped memory for tpu_custom_call.1']
    #allocation17 [shape = 'u8[1024]{0}', space=vmem, size = 0x400, scoped, tag = 'input window, operand 12']
    #allocation18 [shape = 'u8[16384]{0}', space=vmem, size = 0x4000, scoped, tag = 'input window, operand 13']
    #allocation19 [shape = 's32[2]{0}', space=sflag, size = 0x8, scoped, tag = 'scoped memory for tpu_custom_call.1']
    #allocation20 [shape = 'u8[1024]{0}', space=vmem, size = 0x400, scoped, tag = 'input window, operand 14']
    #allocation21 [shape = 'u8[1024]{0}', space=vmem, size = 0x400, scoped, tag = 'input window, operand 16']
    #allocation22 [shape = 's32[2]{0}', space=sflag, size = 0x8, scoped, tag = 'scoped memory for tpu_custom_call.1']
    #allocation23 [shape = 'u8[1024]{0}', space=vmem, size = 0x400, scoped, tag = 'input window, operand 17']
    #allocation24 [shape = 'u8[8192]{0}', space=vmem, size = 0x2000, scoped, tag = 'output window, operand 0']
    %24 = vsyncpa [#allocation4], 0
    %s25 = scalar_lea.sflag [#allocation4], 1
    %26 = vsyncpa %s25, 0
    %27 = vsyncpa [#allocation7], 0
    %s28 = scalar_lea.sflag [#allocation7], 1
    %29 = vsyncpa %s28, 0
    %30 = vsyncpa [#allocation10], 0
    %s31 = scalar_lea.sflag [#allocation10], 1
    %32 = vsyncpa %s31, 0
    %33 = vsyncpa [#allocation13], 0
    %s34 = scalar_lea.sflag [#allocation13], 1
    %35 = vsyncpa %s34, 0
    %36 = vsyncpa [#allocation16], 0
    %s37 = scalar_lea.sflag [#allocation16], 1
    %38 = vsyncpa %s37, 0
    %39 = vsyncpa [#allocation19], 0
    %s40 = scalar_lea.sflag [#allocation19], 1
    %41 = vsyncpa %s40, 0
    %42 = vsyncpa [#allocation22], 0
    %s43 = scalar_lea.sflag [#allocation22], 1
    %44 = vsyncpa %s43, 0
    %45 = vsyncpa [#allocation5], 0
    %s46 = scalar_lea.sflag [#allocation5], 1
    %47 = vsyncpa %s46, 0
    loop: start=0, step=1, limit=6
    $region2: #{tpu_custom_call.1} parent=1 // loop_pre_header
      _
    $region3: #{tpu_custom_call.1} parent=1 // loop_header
      %s49 = sphi 0, %s53
      %p50 = scmp.ge.s32.totalorder %s49, 6
      %s56 = sphi 0, %s68
      %s57 = sphi 0, %s64
      %s58 = sphi 0, %s56
      %s59 = sphi 0, %s57
      %s60 = sphi 0, %s58
      %s61 = sphi 0, %s59
      %s71 = sphi 0, %s73
      %s74 = sphi 0, %s71
      %s75 = sphi 0, %s74
      %s91 = sphi 0, %s75
      %s97 = sphi 0, %s99
      %s100 = sphi 0, %s97
      %s101 = sphi 0, %s100
      %s117 = sphi 0, %s101
      %s123 = sphi 0, %s125
      %s126 = sphi 0, %s123
      %s127 = sphi 0, %s126
      %s143 = sphi 0, %s127
      %s149 = sphi 0, %s151
      %s152 = sphi 0, %s149
      %s153 = sphi 0, %s152
      %s169 = sphi 0, %s153
      %s175 = sphi 0, %s177
      %s178 = sphi 0, %s175
      %s179 = sphi 0, %s178
      %s195 = sphi 0, %s179
      %s201 = sphi 0, %s203
      %s204 = sphi 0, %s201
      %s205 = sphi 0, %s204
      %s221 = sphi 0, %s205
      %s227 = sphi 0, %s229
      %s230 = sphi 0, %s227
      %s231 = sphi 0, %s230
      %s247 = sphi 0, %s231
      %s253 = sphi 0, %s255
      %s256 = sphi 0, %s253
      %s257 = sphi 0, %s256
      %s273 = sphi 0, %s257
      %s279 = sphi 0, %s281
      %s282 = sphi 0, %s279
      %s283 = sphi 0, %s282
      %s299 = sphi 0, %s283
      %s305 = sphi 0, %s307
      %s308 = sphi 0, %s305
      %s309 = sphi 0, %s308
      %s325 = sphi 0, %s309
      %s331 = sphi 0, %s333
      %s334 = sphi 0, %s331
      %s335 = sphi 0, %s334
      %s351 = sphi 0, %s335
      %s357 = sphi 0, %s359
      %s360 = sphi 0, %s357
      %s361 = sphi 0, %s360
      %s377 = sphi 0, %s361
      %s383 = sphi 0, %s385
      %s386 = sphi 0, %s383
      %s387 = sphi 0, %s386
      %s403 = sphi 0, %s387
      %s409 = sphi 0, %s411
      %s412 = sphi 0, %s409
      %s413 = sphi 0, %s412
      %s429 = sphi 0, %s413
      %s435 = sphi 0, %s437
      %s438 = sphi 0, %s435
      %s439 = sphi 0, %s438
      %s455 = sphi 0, %s439
      %s461 = sphi 0, %s463
      %s464 = sphi 0, %s461
      %s465 = sphi 0, %s464
      %s481 = sphi 0, %s465
      %s487 = sphi 0, %s489
      %s490 = sphi 0, %s487
      %s491 = sphi 0, %s490
      %s507 = sphi 0, %s491
      %s513 = sphi 0, %s515
      %s516 = sphi 0, %s513
      %s517 = sphi 0, %s516
      %s533 = sphi 0, %s517
      %s539 = sphi 0, %s541
      %s542 = sphi 0, %s539
      %s543 = sphi 0, %s542
      %s559 = sphi 0, %s543
      %s565 = sphi 0, %s567
      %s568 = sphi 0, %s565
      %s569 = sphi 0, %s568
      %s585 = sphi 0, %s569
    $region4: #{tpu_custom_call.1} parent=1 // loop_header_branch
      %52 = sbr.rel (%p50) target = $region8
    $region5: #{tpu_custom_call.1} parent=1 // loop_body
      %s54 = ssub.s32 %s49, 1
      %s55 = ssub.s32 %s49, 2
      %s62 = sadd.s32 1, %s57
      %p63 = scmp.ge.s32.totalorder %s62, 2
      %s64 = scalar_select %p63, 0, %s62
      %s65 = sadd.s32 1, %s56
      %s66 = scalar_select %p63, %s65, %s56
      %p67 = scmp.ge.s32.totalorder %s66, 2
      %s68 = scalar_select %p67, 0, %s66
      %s69 = ssub.s32 %s56, %s68
      %p70 = scmp.eq.s32.totalorder %s69, 0
      %s72 = sadd.s32 %s71, 1
      %s73 = scalar_select %p70, %s71, %s72
      %p76 = pneg %p70
      %p77 = scmp.eq.s32.totalorder %s49, 3
      %p78 = por %p76, %p77
      %p79 = scmp.ne.s32.totalorder %s71, %s74
      %p80 = scmp.eq.s32.totalorder %s49, 0
      %p81 = por %p79, %p80
      %p82 = scmp.ne.s32.totalorder %s71, %s74
      %p83 = scmp.eq.s32.totalorder %s54, 3
      %p84 = por %p82, %p83
      %p85 = scmp.ne.s32.totalorder %s74, %s75
      %p86 = scmp.eq.s32.totalorder %s54, 0
      %p87 = por %p85, %p86
      %p88 = scmp.ne.s32.totalorder %s74, %s75
      %p89 = scmp.eq.s32.totalorder %s55, 3
      %p90 = por %p88, %p89
      %p92 = scmp.ne.s32.totalorder %s75, %s91
      %p93 = scmp.eq.s32.totalorder %s55, 0
      %p94 = por %p92, %p93
      %s95 = ssub.s32 %s56, %s68
      %p96 = scmp.eq.s32.totalorder %s95, 0
      %s98 = sadd.s32 %s97, 1
      %s99 = scalar_select %p96, %s97, %s98
      %p102 = pneg %p96
      %p103 = scmp.eq.s32.totalorder %s49, 3
      %p104 = por %p102, %p103
      %p105 = scmp.ne.s32.totalorder %s97, %s100
      %p106 = scmp.eq.s32.totalorder %s49, 0
      %p107 = por %p105, %p106
      %p108 = scmp.ne.s32.totalorder %s97, %s100
      %p109 = scmp.eq.s32.totalorder %s54, 3
      %p110 = por %p108, %p109
      %p111 = scmp.ne.s32.totalorder %s100, %s101
      %p112 = scmp.eq.s32.totalorder %s54, 0
      %p113 = por %p111, %p112
      %p114 = scmp.ne.s32.totalorder %s100, %s101
      %p115 = scmp.eq.s32.totalorder %s55, 3
      %p116 = por %p114, %p115
      %p118 = scmp.ne.s32.totalorder %s101, %s117
      %p119 = scmp.eq.s32.totalorder %s55, 0
      %p120 = por %p118, %p119
      %s121 = ssub.s32 %s56, %s68
      %p122 = scmp.eq.s32.totalorder %s121, 0
      %s124 = sadd.s32 %s123, 1
      %s125 = scalar_select %p122, %s123, %s124
      %p128 = pneg %p122
      %p129 = scmp.eq.s32.totalorder %s49, 3
      %p130 = por %p128, %p129
      %p131 = scmp.ne.s32.totalorder %s123, %s126
      %p132 = scmp.eq.s32.totalorder %s49, 0
      %p133 = por %p131, %p132
      %p134 = scmp.ne.s32.totalorder %s123, %s126
      %p135 = scmp.eq.s32.totalorder %s54, 3
      %p136 = por %p134, %p135
      %p137 = scmp.ne.s32.totalorder %s126, %s127
      %p138 = scmp.eq.s32.totalorder %s54, 0
      %p139 = por %p137, %p138
      %p140 = scmp.ne.s32.totalorder %s126, %s127
      %p141 = scmp.eq.s32.totalorder %s55, 3
      %p142 = por %p140, %p141
      %p144 = scmp.ne.s32.totalorder %s127, %s143
      %p145 = scmp.eq.s32.totalorder %s55, 0
      %p146 = por %p144, %p145
      %s147 = ssub.s32 %s57, %s64
      %p148 = scmp.eq.s32.totalorder %s147, 0
      %s150 = sadd.s32 %s149, 1
      %s151 = scalar_select %p148, %s149, %s150
      %p154 = pneg %p148
      %p155 = scmp.eq.s32.totalorder %s49, 3
      %p156 = por %p154, %p155
      %p157 = scmp.ne.s32.totalorder %s149, %s152
      %p158 = scmp.eq.s32.totalorder %s49, 0
      %p159 = por %p157, %p158
      %p160 = scmp.ne.s32.totalorder %s149, %s152
      %p161 = scmp.eq.s32.totalorder %s54, 3
      %p162 = por %p160, %p161
      %p163 = scmp.ne.s32.totalorder %s152, %s153
      %p164 = scmp.eq.s32.totalorder %s54, 0
      %p165 = por %p163, %p164
      %p166 = scmp.ne.s32.totalorder %s152, %s153
      %p167 = scmp.eq.s32.totalorder %s55, 3
      %p168 = por %p166, %p167
      %p170 = scmp.ne.s32.totalorder %s153, %s169
      %p171 = scmp.eq.s32.totalorder %s55, 0
      %p172 = por %p170, %p171
      %s173 = ssub.s32 %s57, %s64
      %p174 = scmp.eq.s32.totalorder %s173, 0
      %s176 = sadd.s32 %s175, 1
      %s177 = scalar_select %p174, %s175, %s176
      %p180 = pneg %p174
      %p181 = scmp.eq.s32.totalorder %s49, 3
      %p182 = por %p180, %p181
      %p183 = scmp.ne.s32.totalorder %s175, %s178
      %p184 = scmp.eq.s32.totalorder %s49, 0
      %p185 = por %p183, %p184
      %p186 = scmp.ne.s32.totalorder %s175, %s178
      %p187 = scmp.eq.s32.totalorder %s54, 3
      %p188 = por %p186, %p187
      %p189 = scmp.ne.s32.totalorder %s178, %s179
      %p190 = scmp.eq.s32.totalorder %s54, 0
      %p191 = por %p189, %p190
      %p192 = scmp.ne.s32.totalorder %s178, %s179
      %p193 = scmp.eq.s32.totalorder %s55, 3
      %p194 = por %p192, %p193
      %p196 = scmp.ne.s32.totalorder %s179, %s195
      %p197 = scmp.eq.s32.totalorder %s55, 0
      %p198 = por %p196, %p197
      %s199 = ssub.s32 %s57, %s64
      %p200 = scmp.eq.s32.totalorder %s199, 0
      %s202 = sadd.s32 %s201, 1
      %s203 = scalar_select %p200, %s201, %s202
      %p206 = pneg %p200
      %p207 = scmp.eq.s32.totalorder %s49, 3
      %p208 = por %p206, %p207
      %p209 = scmp.ne.s32.totalorder %s201, %s204
      %p210 = scmp.eq.s32.totalorder %s49, 0
      %p211 = por %p209, %p210
      %p212 = scmp.ne.s32.totalorder %s201, %s204
      %p213 = scmp.eq.s32.totalorder %s54, 3
      %p214 = por %p212, %p213
      %p215 = scmp.ne.s32.totalorder %s204, %s205
      %p216 = scmp.eq.s32.totalorder %s54, 0
      %p217 = por %p215, %p216
      %p218 = scmp.ne.s32.totalorder %s204, %s205
      %p219 = scmp.eq.s32.totalorder %s55, 3
      %p220 = por %p218, %p219
      %p222 = scmp.ne.s32.totalorder %s205, %s221
      %p223 = scmp.eq.s32.totalorder %s55, 0
      %p224 = por %p222, %p223
      %s225 = ssub.s32 %s57, %s64
      %p226 = scmp.eq.s32.totalorder %s225, 0
      %s228 = sadd.s32 %s227, 1
      %s229 = scalar_select %p226, %s227, %s228
      %p232 = pneg %p226
      %p233 = scmp.eq.s32.totalorder %s49, 3
      %p234 = por %p232, %p233
      %p235 = scmp.ne.s32.totalorder %s227, %s230
      %p236 = scmp.eq.s32.totalorder %s49, 0
      %p237 = por %p235, %p236
      %p238 = scmp.ne.s32.totalorder %s227, %s230
      %p239 = scmp.eq.s32.totalorder %s54, 3
      %p240 = por %p238, %p239
      %p241 = scmp.ne.s32.totalorder %s230, %s231
      %p242 = scmp.eq.s32.totalorder %s54, 0
      %p243 = por %p241, %p242
      %p244 = scmp.ne.s32.totalorder %s230, %s231
      %p245 = scmp.eq.s32.totalorder %s55, 3
      %p246 = por %p244, %p245
      %p248 = scmp.ne.s32.totalorder %s231, %s247
      %p249 = scmp.eq.s32.totalorder %s55, 0
      %p250 = por %p248, %p249
      %s251 = ssub.s32 %s57, %s64
      %p252 = scmp.eq.s32.totalorder %s251, 0
      %s254 = sadd.s32 %s253, 1
      %s255 = scalar_select %p252, %s253, %s254
      %p258 = pneg %p252
      %p259 = scmp.eq.s32.totalorder %s49, 3
      %p260 = por %p258, %p259
      %p261 = scmp.ne.s32.totalorder %s253, %s256
      %p262 = scmp.eq.s32.totalorder %s49, 0
      %p263 = por %p261, %p262
      %p264 = scmp.ne.s32.totalorder %s253, %s256
      %p265 = scmp.eq.s32.totalorder %s54, 3
      %p266 = por %p264, %p265
      %p267 = scmp.ne.s32.totalorder %s256, %s257
      %p268 = scmp.eq.s32.totalorder %s54, 0
      %p269 = por %p267, %p268
      %p270 = scmp.ne.s32.totalorder %s256, %s257
      %p271 = scmp.eq.s32.totalorder %s55, 3
      %p272 = por %p270, %p271
      %p274 = scmp.ne.s32.totalorder %s257, %s273
      %p275 = scmp.eq.s32.totalorder %s55, 0
      %p276 = por %p274, %p275
      %s277 = ssub.s32 %s57, %s64
      %p278 = scmp.eq.s32.totalorder %s277, 0
      %s280 = sadd.s32 %s279, 1
      %s281 = scalar_select %p278, %s279, %s280
      %p284 = pneg %p278
      %p285 = scmp.eq.s32.totalorder %s49, 3
      %p286 = por %p284, %p285
      %p287 = scmp.ne.s32.totalorder %s279, %s282
      %p288 = scmp.eq.s32.totalorder %s49, 0
      %p289 = por %p287, %p288
      %p290 = scmp.ne.s32.totalorder %s279, %s282
      %p291 = scmp.eq.s32.totalorder %s54, 3
      %p292 = por %p290, %p291
      %p293 = scmp.ne.s32.totalorder %s282, %s283
      %p294 = scmp.eq.s32.totalorder %s54, 0
      %p295 = por %p293, %p294
      %p296 = scmp.ne.s32.totalorder %s282, %s283
      %p297 = scmp.eq.s32.totalorder %s55, 3
      %p298 = por %p296, %p297
      %p300 = scmp.ne.s32.totalorder %s283, %s299
      %p301 = scmp.eq.s32.totalorder %s55, 0
      %p302 = por %p300, %p301
      %s303 = ssub.s32 %s57, %s64
      %p304 = scmp.eq.s32.totalorder %s303, 0
      %s306 = sadd.s32 %s305, 1
      %s307 = scalar_select %p304, %s305, %s306
      %p310 = pneg %p304
      %p311 = scmp.eq.s32.totalorder %s49, 3
      %p312 = por %p310, %p311
      %p313 = scmp.ne.s32.totalorder %s305, %s308
      %p314 = scmp.eq.s32.totalorder %s49, 0
      %p315 = por %p313, %p314
      %p316 = scmp.ne.s32.totalorder %s305, %s308
      %p317 = scmp.eq.s32.totalorder %s54, 3
      %p318 = por %p316, %p317
      %p319 = scmp.ne.s32.totalorder %s308, %s309
      %p320 = scmp.eq.s32.totalorder %s54, 0
      %p321 = por %p319, %p320
      %p322 = scmp.ne.s32.totalorder %s308, %s309
      %p323 = scmp.eq.s32.totalorder %s55, 3
      %p324 = por %p322, %p323
      %p326 = scmp.ne.s32.totalorder %s309, %s325
      %p327 = scmp.eq.s32.totalorder %s55, 0
      %p328 = por %p326, %p327
      %s329 = ssub.s32 %s57, %s64
      %p330 = scmp.eq.s32.totalorder %s329, 0
      %s332 = sadd.s32 %s331, 1
      %s333 = scalar_select %p330, %s331, %s332
      %p336 = pneg %p330
      %p337 = scmp.eq.s32.totalorder %s49, 3
      %p338 = por %p336, %p337
      %p339 = scmp.ne.s32.totalorder %s331, %s334
      %p340 = scmp.eq.s32.totalorder %s49, 0
      %p341 = por %p339, %p340
      %p342 = scmp.ne.s32.totalorder %s331, %s334
      %p343 = scmp.eq.s32.totalorder %s54, 3
      %p344 = por %p342, %p343
      %p345 = scmp.ne.s32.totalorder %s334, %s335
      %p346 = scmp.eq.s32.totalorder %s54, 0
      %p347 = por %p345, %p346
      %p348 = scmp.ne.s32.totalorder %s334, %s335
      %p349 = scmp.eq.s32.totalorder %s55, 3
      %p350 = por %p348, %p349
      %p352 = scmp.ne.s32.totalorder %s335, %s351
      %p353 = scmp.eq.s32.totalorder %s55, 0
      %p354 = por %p352, %p353
      %s355 = ssub.s32 %s57, %s64
      %p356 = scmp.eq.s32.totalorder %s355, 0
      %s358 = sadd.s32 %s357, 1
      %s359 = scalar_select %p356, %s357, %s358
      %p362 = pneg %p356
      %p363 = scmp.eq.s32.totalorder %s49, 3
      %p364 = por %p362, %p363
      %p365 = scmp.ne.s32.totalorder %s357, %s360
      %p366 = scmp.eq.s32.totalorder %s49, 0
      %p367 = por %p365, %p366
      %p368 = scmp.ne.s32.totalorder %s357, %s360
      %p369 = scmp.eq.s32.totalorder %s54, 3
      %p370 = por %p368, %p369
      %p371 = scmp.ne.s32.totalorder %s360, %s361
      %p372 = scmp.eq.s32.totalorder %s54, 0
      %p373 = por %p371, %p372
      %p374 = scmp.ne.s32.totalorder %s360, %s361
      %p375 = scmp.eq.s32.totalorder %s55, 3
      %p376 = por %p374, %p375
      %p378 = scmp.ne.s32.totalorder %s361, %s377
      %p379 = scmp.eq.s32.totalorder %s55, 0
      %p380 = por %p378, %p379
      %s381 = ssub.s32 %s57, %s64
      %p382 = scmp.eq.s32.totalorder %s381, 0
      %s384 = sadd.s32 %s383, 1
      %s385 = scalar_select %p382, %s383, %s384
      %p388 = pneg %p382
      %p389 = scmp.eq.s32.totalorder %s49, 3
      %p390 = por %p388, %p389
      %p391 = scmp.ne.s32.totalorder %s383, %s386
      %p392 = scmp.eq.s32.totalorder %s49, 0
      %p393 = por %p391, %p392
      %p394 = scmp.ne.s32.totalorder %s383, %s386
      %p395 = scmp.eq.s32.totalorder %s54, 3
      %p396 = por %p394, %p395
      %p397 = scmp.ne.s32.totalorder %s386, %s387
      %p398 = scmp.eq.s32.totalorder %s54, 0
      %p399 = por %p397, %p398
      %p400 = scmp.ne.s32.totalorder %s386, %s387
      %p401 = scmp.eq.s32.totalorder %s55, 3
      %p402 = por %p400, %p401
      %p404 = scmp.ne.s32.totalorder %s387, %s403
      %p405 = scmp.eq.s32.totalorder %s55, 0
      %p406 = por %p404, %p405
      %s407 = ssub.s32 %s57, %s64
      %p408 = scmp.eq.s32.totalorder %s407, 0
      %s410 = sadd.s32 %s409, 1
      %s411 = scalar_select %p408, %s409, %s410
      %p414 = pneg %p408
      %p415 = scmp.eq.s32.totalorder %s49, 3
      %p416 = por %p414, %p415
      %p417 = scmp.ne.s32.totalorder %s409, %s412
      %p418 = scmp.eq.s32.totalorder %s49, 0
      %p419 = por %p417, %p418
      %p420 = scmp.ne.s32.totalorder %s409, %s412
      %p421 = scmp.eq.s32.totalorder %s54, 3
      %p422 = por %p420, %p421
      %p423 = scmp.ne.s32.totalorder %s412, %s413
      %p424 = scmp.eq.s32.totalorder %s54, 0
      %p425 = por %p423, %p424
      %p426 = scmp.ne.s32.totalorder %s412, %s413
      %p427 = scmp.eq.s32.totalorder %s55, 3
      %p428 = por %p426, %p427
      %p430 = scmp.ne.s32.totalorder %s413, %s429
      %p431 = scmp.eq.s32.totalorder %s55, 0
      %p432 = por %p430, %p431
      %s433 = ssub.s32 %s57, %s64
      %p434 = scmp.eq.s32.totalorder %s433, 0
      %s436 = sadd.s32 %s435, 1
      %s437 = scalar_select %p434, %s435, %s436
      %p440 = pneg %p434
      %p441 = scmp.eq.s32.totalorder %s49, 3
      %p442 = por %p440, %p441
      %p443 = scmp.ne.s32.totalorder %s435, %s438
      %p444 = scmp.eq.s32.totalorder %s49, 0
      %p445 = por %p443, %p444
      %p446 = scmp.ne.s32.totalorder %s435, %s438
      %p447 = scmp.eq.s32.totalorder %s54, 3
      %p448 = por %p446, %p447
      %p449 = scmp.ne.s32.totalorder %s438, %s439
      %p450 = scmp.eq.s32.totalorder %s54, 0
      %p451 = por %p449, %p450
      %p452 = scmp.ne.s32.totalorder %s438, %s439
      %p453 = scmp.eq.s32.totalorder %s55, 3
      %p454 = por %p452, %p453
      %p456 = scmp.ne.s32.totalorder %s439, %s455
      %p457 = scmp.eq.s32.totalorder %s55, 0
      %p458 = por %p456, %p457
      %s459 = ssub.s32 %s57, %s64
      %p460 = scmp.eq.s32.totalorder %s459, 0
      %s462 = sadd.s32 %s461, 1
      %s463 = scalar_select %p460, %s461, %s462
      %p466 = pneg %p460
      %p467 = scmp.eq.s32.totalorder %s49, 3
      %p468 = por %p466, %p467
      %p469 = scmp.ne.s32.totalorder %s461, %s464
      %p470 = scmp.eq.s32.totalorder %s49, 0
      %p471 = por %p469, %p470
      %p472 = scmp.ne.s32.totalorder %s461, %s464
      %p473 = scmp.eq.s32.totalorder %s54, 3
      %p474 = por %p472, %p473
      %p475 = scmp.ne.s32.totalorder %s464, %s465
      %p476 = scmp.eq.s32.totalorder %s54, 0
      %p477 = por %p475, %p476
      %p478 = scmp.ne.s32.totalorder %s464, %s465
      %p479 = scmp.eq.s32.totalorder %s55, 3
      %p480 = por %p478, %p479
      %p482 = scmp.ne.s32.totalorder %s465, %s481
      %p483 = scmp.eq.s32.totalorder %s55, 0
      %p484 = por %p482, %p483
      %s485 = ssub.s32 %s57, %s64
      %p486 = scmp.eq.s32.totalorder %s485, 0
      %s488 = sadd.s32 %s487, 1
      %s489 = scalar_select %p486, %s487, %s488
      %p492 = pneg %p486
      %p493 = scmp.eq.s32.totalorder %s49, 3
      %p494 = por %p492, %p493
      %p495 = scmp.ne.s32.totalorder %s487, %s490
      %p496 = scmp.eq.s32.totalorder %s49, 0
      %p497 = por %p495, %p496
      %p498 = scmp.ne.s32.totalorder %s487, %s490
      %p499 = scmp.eq.s32.totalorder %s54, 3
      %p500 = por %p498, %p499
      %p501 = scmp.ne.s32.totalorder %s490, %s491
      %p502 = scmp.eq.s32.totalorder %s54, 0
      %p503 = por %p501, %p502
      %p504 = scmp.ne.s32.totalorder %s490, %s491
      %p505 = scmp.eq.s32.totalorder %s55, 3
      %p506 = por %p504, %p505
      %p508 = scmp.ne.s32.totalorder %s491, %s507
      %p509 = scmp.eq.s32.totalorder %s55, 0
      %p510 = por %p508, %p509
      %s511 = ssub.s32 %s57, %s64
      %p512 = scmp.eq.s32.totalorder %s511, 0
      %s514 = sadd.s32 %s513, 1
      %s515 = scalar_select %p512, %s513, %s514
      %p518 = pneg %p512
      %p519 = scmp.eq.s32.totalorder %s49, 3
      %p520 = por %p518, %p519
      %p521 = scmp.ne.s32.totalorder %s513, %s516
      %p522 = scmp.eq.s32.totalorder %s49, 0
      %p523 = por %p521, %p522
      %p524 = scmp.ne.s32.totalorder %s513, %s516
      %p525 = scmp.eq.s32.totalorder %s54, 3
      %p526 = por %p524, %p525
      %p527 = scmp.ne.s32.totalorder %s516, %s517
      %p528 = scmp.eq.s32.totalorder %s54, 0
      %p529 = por %p527, %p528
      %p530 = scmp.ne.s32.totalorder %s516, %s517
      %p531 = scmp.eq.s32.totalorder %s55, 3
      %p532 = por %p530, %p531
      %p534 = scmp.ne.s32.totalorder %s517, %s533
      %p535 = scmp.eq.s32.totalorder %s55, 0
      %p536 = por %p534, %p535
      %s537 = ssub.s32 %s57, %s64
      %p538 = scmp.eq.s32.totalorder %s537, 0
      %s540 = sadd.s32 %s539, 1
      %s541 = scalar_select %p538, %s539, %s540
      %p544 = pneg %p538
      %p545 = scmp.eq.s32.totalorder %s49, 3
      %p546 = por %p544, %p545
      %p547 = scmp.ne.s32.totalorder %s539, %s542
      %p548 = scmp.eq.s32.totalorder %s49, 0
      %p549 = por %p547, %p548
      %p550 = scmp.ne.s32.totalorder %s539, %s542
      %p551 = scmp.eq.s32.totalorder %s54, 3
      %p552 = por %p550, %p551
      %p553 = scmp.ne.s32.totalorder %s542, %s543
      %p554 = scmp.eq.s32.totalorder %s54, 0
      %p555 = por %p553, %p554
      %p556 = scmp.ne.s32.totalorder %s542, %s543
      %p557 = scmp.eq.s32.totalorder %s55, 3
      %p558 = por %p556, %p557
      %p560 = scmp.ne.s32.totalorder %s543, %s559
      %p561 = scmp.eq.s32.totalorder %s55, 0
      %p562 = por %p560, %p561
      %s563 = ssub.s32 %s56, %s68
      %p564 = scmp.eq.s32.totalorder %s563, 0
      %s566 = sadd.s32 %s565, 1
      %s567 = scalar_select %p564, %s565, %s566
      %p570 = pneg %p564
      %p571 = scmp.eq.s32.totalorder %s49, 3
      %p572 = por %p570, %p571
      %p573 = scmp.ne.s32.totalorder %s565, %s568
      %p574 = scmp.eq.s32.totalorder %s49, 0
      %p575 = por %p573, %p574
      %p576 = scmp.ne.s32.totalorder %s565, %s568
      %p577 = scmp.eq.s32.totalorder %s54, 3
      %p578 = por %p576, %p577
      %p579 = scmp.ne.s32.totalorder %s568, %s569
      %p580 = scmp.eq.s32.totalorder %s54, 0
      %p581 = por %p579, %p580
      %p582 = scmp.ne.s32.totalorder %s568, %s569
      %p583 = scmp.eq.s32.totalorder %s55, 3
      %p584 = por %p582, %p583
      %p586 = scmp.ne.s32.totalorder %s569, %s585
      %p587 = scmp.eq.s32.totalorder %s55, 0
      %p588 = por %p586, %p587
      %p589 = scmp.le.s32.totalorder 1, %s49
      %p590 = scmp.lt.s32.totalorder %s49, 5
      %p591 = pnand %p589, %p590
      %p592 = pneg %p591
      // Predicated region
      $region9: #{tpu_custom_call.1} parent=5 // pred_check
        _
      $region10: #{tpu_custom_call.1} parent=5 // pred_check_branch
        %594 = sbr.rel (%p591) target = $region12
      $region11: #{tpu_custom_call.1} parent=5 // pred_region
        %s595 = ssub.s32 %s49, 1
      $region12: #{tpu_custom_call.1} parent=5 // pred_fallthru
        _
      %p596 = scmp.lt.s32.totalorder %s49, 4
      // Predicated region
      $region13: #{tpu_custom_call.1} parent=5 // pred_check
        %p597 = pneg %p596
      $region14: #{tpu_custom_call.1} parent=5 // pred_check_branch
        %599 = sbr.rel (%p597) target = $region16
      $region15: #{tpu_custom_call.1} parent=5 // pred_region
        // Predicated region
        $region17: #{tpu_custom_call.1} parent=15 // pred_check
          %p600 = pneg %p81
        $region18: #{tpu_custom_call.1} parent=15 // pred_check_branch
          %602 = sbr.rel (%p600) target = $region20
        $region19: #{tpu_custom_call.1} parent=15 // pred_region
          %s603 = sand.u32 %s71, 1
          %s604 = scalar_lea.sflag [#allocation4], %s603
          %s605 = sand.u32 %s71, 1
          %s606 = smul.addr %s605, 8
          %s607 = scalar_lea.vmem [#allocation3], %s606
          %609 = vsyncadd %s604, 0
          %s610 = smul.addr %s56, 8
          %s611 = scalar_lea.hbm %s0, %s610
          %s613 = sshll.u32 %s611, 4
          %s614 = int_to_ptr.hbm [resolvable:$true] %s613
          %s615 = sshll.u32 %s607, 4
          %s616 = int_to_ptr.vmem [resolvable:$true] %s615
          %618 = dma.hbm_to_vmem [thread:$0]  %s614, 128, %s616, %s604
        $region20: #{tpu_custom_call.1} parent=15 // pred_fallthru
          _
        // Predicated region
        $region21: #{tpu_custom_call.1} parent=15 // pred_check
          %p619 = pneg %p107
        $region22: #{tpu_custom_call.1} parent=15 // pred_check_branch
          %621 = sbr.rel (%p619) target = $region24
        $region23: #{tpu_custom_call.1} parent=15 // pred_region
          %s622 = sand.u32 %s49, 1
          %s623 = scalar_lea.sflag [#allocation7], %s622
          %s624 = sand.u32 %s97, 1
          %s625 = scalar_lea.vmem [#allocation6], %s624
          %627 = vsyncadd %s623, 0
          %s628 = scalar_lea.hbm %s1, %s56
          %s630 = sshll.u32 %s628, 4
          %s631 = int_to_ptr.hbm [resolvable:$true] %s630
          %s632 = sshll.u32 %s625, 4
          %s633 = int_to_ptr.vmem [resolvable:$true] %s632
          %635 = dma.hbm_to_vmem [thread:$0]  %s631, 16, %s633, %s623
        $region24: #{tpu_custom_call.1} parent=15 // pred_fallthru
          _
        // Predicated region
        $region25: #{tpu_custom_call.1} parent=15 // pred_check
          %p636 = pneg %p133
        $region26: #{tpu_custom_call.1} parent=15 // pred_check_branch
          %638 = sbr.rel (%p636) target = $region28
        $region27: #{tpu_custom_call.1} parent=15 // pred_region
          %p639 = scmp.lt.s32.totalorder %s56, 1
          %s640 = scalar_select %p639, %s56, 1
          %s641 = smul.addr %s640, 8
          %s642 = scalar_lea.vmem %s2, %s641
        $region28: #{tpu_custom_call.1} parent=15 // pred_fallthru
          _
        // Predicated region
        $region29: #{tpu_custom_call.1} parent=15 // pred_check
          %p643 = pneg %p159
        $region30: #{tpu_custom_call.1} parent=15 // pred_check_branch
          %645 = sbr.rel (%p643) target = $region32
        $region31: #{tpu_custom_call.1} parent=15 // pred_region
          %p646 = scmp.lt.s32.totalorder %s57, 1
          %s647 = scalar_select %p646, %s57, 1
          %s648 = smul.addr %s647, 4
          %s649 = smul.addr %s648, 4
          %s650 = scalar_lea.vmem %s3, %s649
        $region32: #{tpu_custom_call.1} parent=15 // pred_fallthru
          _
        // Predicated region
        $region33: #{tpu_custom_call.1} parent=15 // pred_check
          %p651 = pneg %p185
        $region34: #{tpu_custom_call.1} parent=15 // pred_check_branch
          %653 = sbr.rel (%p651) target = $region36
        $region35: #{tpu_custom_call.1} parent=15 // pred_region
          %s654 = sand.u32 %s49, 1
          %s655 = scalar_lea.sflag [#allocation7], %s654
          %s656 = sand.u32 %s175, 1
          %s657 = scalar_lea.vmem [#allocation8], %s656
          %659 = vsyncadd %s655, 0
          %s660 = scalar_lea.hbm %s4, %s57
          %s662 = sshll.u32 %s660, 4
          %s663 = int_to_ptr.hbm [resolvable:$true] %s662
          %s664 = sshll.u32 %s657, 4
          %s665 = int_to_ptr.vmem [resolvable:$true] %s664
          %667 = dma.hbm_to_vmem [thread:$0]  %s663, 16, %s665, %s655
        $region36: #{tpu_custom_call.1} parent=15 // pred_fallthru
          _
        // Predicated region
        $region37: #{tpu_custom_call.1} parent=15 // pred_check
          %p668 = pneg %p211
        $region38: #{tpu_custom_call.1} parent=15 // pred_check_branch
          %670 = sbr.rel (%p668) target = $region40
        $region39: #{tpu_custom_call.1} parent=15 // pred_region
          %p671 = scmp.lt.s32.totalorder %s57, 1
          %s672 = scalar_select %p671, %s57, 1
          %s673 = smul.addr %s672, 4
          %s674 = smul.addr %s673, 4
          %s675 = scalar_lea.vmem %s5, %s674
        $region40: #{tpu_custom_call.1} parent=15 // pred_fallthru
          _
        // Predicated region
        $region41: #{tpu_custom_call.1} parent=15 // pred_check
          %p676 = pneg %p237
        $region42: #{tpu_custom_call.1} parent=15 // pred_check_branch
          %678 = sbr.rel (%p676) target = $region44
        $region43: #{tpu_custom_call.1} parent=15 // pred_region
          %s679 = sand.u32 %s49, 1
          %s680 = scalar_lea.sflag [#allocation10], %s679
          %s681 = sand.u32 %s227, 1
          %s682 = scalar_lea.vmem [#allocation9], %s681
          %684 = vsyncadd %s680, 0
          %s685 = scalar_lea.hbm %s6, %s57
          %s687 = sshll.u32 %s685, 4
          %s688 = int_to_ptr.hbm [resolvable:$true] %s687
          %s689 = sshll.u32 %s682, 4
          %s690 = int_to_ptr.vmem [resolvable:$true] %s689
          %692 = dma.hbm_to_vmem [thread:$0]  %s688, 16, %s690, %s680
        $region44: #{tpu_custom_call.1} parent=15 // pred_fallthru
          _
        // Predicated region
        $region45: #{tpu_custom_call.1} parent=15 // pred_check
          %p693 = pneg %p263
        $region46: #{tpu_custom_call.1} parent=15 // pred_check_branch
          %695 = sbr.rel (%p693) target = $region48
        $region47: #{tpu_custom_call.1} parent=15 // pred_region
          %p696 = scmp.lt.s32.totalorder %s57, 1
          %s697 = scalar_select %p696, %s57, 1
          %s698 = smul.addr %s697, 4
          %s699 = smul.addr %s698, 4
          %s700 = scalar_lea.vmem %s7, %s699
        $region48: #{tpu_custom_call.1} parent=15 // pred_fallthru
          _
        // Predicated region
        $region49: #{tpu_custom_call.1} parent=15 // pred_check
          %p701 = pneg %p289
        $region50: #{tpu_custom_call.1} parent=15 // pred_check_branch
          %703 = sbr.rel (%p701) target = $region52
        $region51: #{tpu_custom_call.1} parent=15 // pred_region
          %s704 = sand.u32 %s49, 1
          %s705 = scalar_lea.sflag [#allocation10], %s704
          %s706 = sand.u32 %s279, 1
          %s707 = scalar_lea.vmem [#allocation11], %s706
          %709 = vsyncadd %s705, 0
          %s710 = scalar_lea.hbm %s8, %s57
          %s712 = sshll.u32 %s710, 4
          %s713 = int_to_ptr.hbm [resolvable:$true] %s712
          %s714 = sshll.u32 %s707, 4
          %s715 = int_to_ptr.vmem [resolvable:$true] %s714
          %717 = dma.hbm_to_vmem [thread:$0]  %s713, 16, %s715, %s705
        $region52: #{tpu_custom_call.1} parent=15 // pred_fallthru
          _
        // Predicated region
        $region53: #{tpu_custom_call.1} parent=15 // pred_check
          %p718 = pneg %p315
        $region54: #{tpu_custom_call.1} parent=15 // pred_check_branch
          %720 = sbr.rel (%p718) target = $region56
        $region55: #{tpu_custom_call.1} parent=15 // pred_region
          %s721 = sand.u32 %s49, 1
          %s722 = scalar_lea.sflag [#allocation13], %s721
          %s723 = sand.u32 %s305, 1
          %s724 = smul.addr %s723, 16
          %s725 = scalar_lea.vmem [#allocation12], %s724
          %727 = vsyncadd %s722, 0
          %s728 = smul.addr %s57, 4
          %s729 = smul.addr %s728, 4
          %s730 = scalar_lea.hbm %s9, %s729
          %s731 = sshll.u32 %s730, 4
          %s732 = int_to_ptr.hbm [resolvable:$true] %s731
          %s733 = sshll.u32 %s725, 4
          %s734 = int_to_ptr.vmem [resolvable:$true] %s733
          %739 = dma.hbm_to_vmem [thread:$0]  %s732, 256, %s734, %s722, 64, 64, 4
        $region56: #{tpu_custom_call.1} parent=15 // pred_fallthru
          _
        // Predicated region
        $region57: #{tpu_custom_call.1} parent=15 // pred_check
          %p740 = pneg %p341
        $region58: #{tpu_custom_call.1} parent=15 // pred_check_branch
          %742 = sbr.rel (%p740) target = $region60
        $region59: #{tpu_custom_call.1} parent=15 // pred_region
          %s743 = sand.u32 %s49, 1
          %s744 = scalar_lea.sflag [#allocation13], %s743
          %s745 = sand.u32 %s331, 1
          %s746 = scalar_lea.vmem [#allocation14], %s745
          %748 = vsyncadd %s744, 0
          %s749 = scalar_lea.hbm %s10, %s57
          %s751 = sshll.u32 %s749, 4
          %s752 = int_to_ptr.hbm [resolvable:$true] %s751
          %s753 = sshll.u32 %s746, 4
          %s754 = int_to_ptr.vmem [resolvable:$true] %s753
          %756 = dma.hbm_to_vmem [thread:$0]  %s752, 16, %s754, %s744
        $region60: #{tpu_custom_call.1} parent=15 // pred_fallthru
          _
        // Predicated region
        $region61: #{tpu_custom_call.1} parent=15 // pred_check
          %p757 = pneg %p367
        $region62: #{tpu_custom_call.1} parent=15 // pred_check_branch
          %759 = sbr.rel (%p757) target = $region64
        $region63: #{tpu_custom_call.1} parent=15 // pred_region
          %s760 = sand.u32 %s49, 1
          %s761 = scalar_lea.sflag [#allocation16], %s760
          %s762 = sand.u32 %s357, 1
          %s763 = scalar_lea.vmem [#allocation15], %s762
          %765 = vsyncadd %s761, 0
          %s766 = scalar_lea.hbm %s11, %s57
          %s768 = sshll.u32 %s766, 4
          %s769 = int_to_ptr.hbm [resolvable:$true] %s768
          %s770 = sshll.u32 %s763, 4
          %s771 = int_to_ptr.vmem [resolvable:$true] %s770
          %773 = dma.hbm_to_vmem [thread:$0]  %s769, 16, %s771, %s761
        $region64: #{tpu_custom_call.1} parent=15 // pred_fallthru
          _
        // Predicated region
        $region65: #{tpu_custom_call.1} parent=15 // pred_check
          %p774 = pneg %p393
        $region66: #{tpu_custom_call.1} parent=15 // pred_check_branch
          %776 = sbr.rel (%p774) target = $region68
        $region67: #{tpu_custom_call.1} parent=15 // pred_region
          %s777 = sand.u32 %s49, 1
          %s778 = scalar_lea.sflag [#allocation16], %s777
          %s779 = sand.u32 %s383, 1
          %s780 = scalar_lea.vmem [#allocation17], %s779
          %782 = vsyncadd %s778, 0
          %s783 = scalar_lea.hbm %s12, %s57
          %s785 = sshll.u32 %s783, 4
          %s786 = int_to_ptr.hbm [resolvable:$true] %s785
          %s787 = sshll.u32 %s780, 4
          %s788 = int_to_ptr.vmem [resolvable:$true] %s787
          %790 = dma.hbm_to_vmem [thread:$0]  %s786, 16, %s788, %s778
        $region68: #{tpu_custom_call.1} parent=15 // pred_fallthru
          _
        // Predicated region
        $region69: #{tpu_custom_call.1} parent=15 // pred_check
          %p791 = pneg %p419
        $region70: #{tpu_custom_call.1} parent=15 // pred_check_branch
          %793 = sbr.rel (%p791) target = $region72
        $region71: #{tpu_custom_call.1} parent=15 // pred_region
          %s794 = sand.u32 %s49, 1
          %s795 = scalar_lea.sflag [#allocation19], %s794
          %s796 = sand.u32 %s409, 1
          %s797 = smul.addr %s796, 16
          %s798 = scalar_lea.vmem [#allocation18], %s797
          %800 = vsyncadd %s795, 0
          %s801 = smul.addr %s57, 4
          %s802 = smul.addr %s801, 4
          %s803 = scalar_lea.hbm %s13, %s802
          %s804 = sshll.u32 %s803, 4
          %s805 = int_to_ptr.hbm [resolvable:$true] %s804
          %s806 = sshll.u32 %s798, 4
          %s807 = int_to_ptr.vmem [resolvable:$true] %s806
          %812 = dma.hbm_to_vmem [thread:$0]  %s805, 256, %s807, %s795, 64, 64, 4
        $region72: #{tpu_custom_call.1} parent=15 // pred_fallthru
          _
        // Predicated region
        $region73: #{tpu_custom_call.1} parent=15 // pred_check
          %p813 = pneg %p445
        $region74: #{tpu_custom_call.1} parent=15 // pred_check_branch
          %815 = sbr.rel (%p813) target = $region76
        $region75: #{tpu_custom_call.1} parent=15 // pred_region
          %s816 = sand.u32 %s49, 1
          %s817 = scalar_lea.sflag [#allocation19], %s816
          %s818 = sand.u32 %s435, 1
          %s819 = scalar_lea.vmem [#allocation20], %s818
          %821 = vsyncadd %s817, 0
          %s822 = scalar_lea.hbm %s14, %s57
          %s824 = sshll.u32 %s822, 4
          %s825 = int_to_ptr.hbm [resolvable:$true] %s824
          %s826 = sshll.u32 %s819, 4
          %s827 = int_to_ptr.vmem [resolvable:$true] %s826
          %829 = dma.hbm_to_vmem [thread:$0]  %s825, 16, %s827, %s817
        $region76: #{tpu_custom_call.1} parent=15 // pred_fallthru
          _
        // Predicated region
        $region77: #{tpu_custom_call.1} parent=15 // pred_check
          %p830 = pneg %p471
        $region78: #{tpu_custom_call.1} parent=15 // pred_check_branch
          %832 = sbr.rel (%p830) target = $region80
        $region79: #{tpu_custom_call.1} parent=15 // pred_region
          %p833 = scmp.lt.s32.totalorder %s57, 1
          %s834 = scalar_select %p833, %s57, 1
          %s835 = smul.addr %s834, 8
          %s836 = smul.addr %s835, 4
          %s837 = scalar_lea.vmem %s15, %s836
        $region80: #{tpu_custom_call.1} parent=15 // pred_fallthru
          _
        // Predicated region
        $region81: #{tpu_custom_call.1} parent=15 // pred_check
          %p838 = pneg %p497
        $region82: #{tpu_custom_call.1} parent=15 // pred_check_branch
          %840 = sbr.rel (%p838) target = $region84
        $region83: #{tpu_custom_call.1} parent=15 // pred_region
          %s841 = sand.u32 %s49, 1
          %s842 = scalar_lea.sflag [#allocation22], %s841
          %s843 = sand.u32 %s487, 1
          %s844 = scalar_lea.vmem [#allocation21], %s843
          %846 = vsyncadd %s842, 0
          %s847 = scalar_lea.hbm %s16, %s57
          %s849 = sshll.u32 %s847, 4
          %s850 = int_to_ptr.hbm [resolvable:$true] %s849
          %s851 = sshll.u32 %s844, 4
          %s852 = int_to_ptr.vmem [resolvable:$true] %s851
          %854 = dma.hbm_to_vmem [thread:$0]  %s850, 16, %s852, %s842
        $region84: #{tpu_custom_call.1} parent=15 // pred_fallthru
          _
        // Predicated region
        $region85: #{tpu_custom_call.1} parent=15 // pred_check
          %p855 = pneg %p523
        $region86: #{tpu_custom_call.1} parent=15 // pred_check_branch
          %857 = sbr.rel (%p855) target = $region88
        $region87: #{tpu_custom_call.1} parent=15 // pred_region
          %s858 = sand.u32 %s49, 1
          %s859 = scalar_lea.sflag [#allocation22], %s858
          %s860 = sand.u32 %s513, 1
          %s861 = scalar_lea.vmem [#allocation23], %s860
          %863 = vsyncadd %s859, 0
          %s864 = scalar_lea.hbm %s17, %s57
          %s866 = sshll.u32 %s864, 4
          %s867 = int_to_ptr.hbm [resolvable:$true] %s866
          %s868 = sshll.u32 %s861, 4
          %s869 = int_to_ptr.vmem [resolvable:$true] %s868
          %871 = dma.hbm_to_vmem [thread:$0]  %s867, 16, %s869, %s859
        $region88: #{tpu_custom_call.1} parent=15 // pred_fallthru
          _
        // Predicated region
        $region89: #{tpu_custom_call.1} parent=15 // pred_check
          %p872 = pneg %p549
        $region90: #{tpu_custom_call.1} parent=15 // pred_check_branch
          %874 = sbr.rel (%p872) target = $region92
        $region91: #{tpu_custom_call.1} parent=15 // pred_region
          %p875 = scmp.lt.s32.totalorder %s57, 1
          %s876 = scalar_select %p875, %s57, 1
          %s877 = scalar_lea.vmem %s18, %s876
        $region92: #{tpu_custom_call.1} parent=15 // pred_fallthru
          _
      $region16: #{tpu_custom_call.1} parent=5 // pred_fallthru
        _
      %p878 = scmp.le.s32.totalorder 1, %s49
      %p879 = scmp.lt.s32.totalorder %s49, 5
      %p880 = pnand %p878, %p879
      %p881 = pneg %p880
      // Predicated region
      $region93: #{tpu_custom_call.1} parent=5 // pred_check
        _
      $region94: #{tpu_custom_call.1} parent=5 // pred_check_branch
        %883 = sbr.rel (%p880) target = $region96
      $region95: #{tpu_custom_call.1} parent=5 // pred_region
        %s884 = ssub.s32 %s49, 1
        %s885 = sand.u32 %s74, 1
        %s886 = scalar_lea.sflag [#allocation4], %s885
        %s887 = sand.u32 %s74, 1
        %s888 = smul.addr %s887, 8
        %s889 = scalar_lea.vmem [#allocation3], %s888
        // Predicated region
        $region97: #{tpu_custom_call.1} parent=95 // pred_check
          %p890 = pneg %p87
        $region98: #{tpu_custom_call.1} parent=95 // pred_check_branch
          %892 = sbr.rel (%p890) target = $region100
        $region99: #{tpu_custom_call.1} parent=95 // pred_region
          %894 = dma.done %s886, 128
        $region100: #{tpu_custom_call.1} parent=95 // pred_fallthru
          _
        %s895 = sand.u32 %s54, 1
        %s896 = scalar_lea.sflag [#allocation7], %s895
        %s897 = sand.u32 %s100, 1
        %s898 = scalar_lea.vmem [#allocation6], %s897
        // Predicated region
        $region101: #{tpu_custom_call.1} parent=95 // pred_check
          %p899 = pneg %p113
        $region102: #{tpu_custom_call.1} parent=95 // pred_check_branch
          %901 = sbr.rel (%p899) target = $region104
        $region103: #{tpu_custom_call.1} parent=95 // pred_region
          %903 = dma.done %s896, 16
        $region104: #{tpu_custom_call.1} parent=95 // pred_fallthru
          _
        %s904 = sand.u32 %s54, 1
        %s905 = scalar_lea.sflag [#allocation7], %s904
        %s906 = sand.u32 %s178, 1
        %s907 = scalar_lea.vmem [#allocation8], %s906
        // Predicated region
        $region105: #{tpu_custom_call.1} parent=95 // pred_check
          %p908 = pneg %p191
        $region106: #{tpu_custom_call.1} parent=95 // pred_check_branch
          %910 = sbr.rel (%p908) target = $region108
        $region107: #{tpu_custom_call.1} parent=95 // pred_region
          %912 = dma.done %s905, 16
        $region108: #{tpu_custom_call.1} parent=95 // pred_fallthru
          _
        %s913 = sand.u32 %s54, 1
        %s914 = scalar_lea.sflag [#allocation10], %s913
        %s915 = sand.u32 %s230, 1
        %s916 = scalar_lea.vmem [#allocation9], %s915
        // Predicated region
        $region109: #{tpu_custom_call.1} parent=95 // pred_check
          %p917 = pneg %p243
        $region110: #{tpu_custom_call.1} parent=95 // pred_check_branch
          %919 = sbr.rel (%p917) target = $region112
        $region111: #{tpu_custom_call.1} parent=95 // pred_region
          %921 = dma.done %s914, 16
        $region112: #{tpu_custom_call.1} parent=95 // pred_fallthru
          _
        %s922 = sand.u32 %s54, 1
        %s923 = scalar_lea.sflag [#allocation10], %s922
        %s924 = sand.u32 %s282, 1
        %s925 = scalar_lea.vmem [#allocation11], %s924
        // Predicated region
        $region113: #{tpu_custom_call.1} parent=95 // pred_check
          %p926 = pneg %p295
        $region114: #{tpu_custom_call.1} parent=95 // pred_check_branch
          %928 = sbr.rel (%p926) target = $region116
        $region115: #{tpu_custom_call.1} parent=95 // pred_region
          %930 = dma.done %s923, 16
        $region116: #{tpu_custom_call.1} parent=95 // pred_fallthru
          _
        %s931 = sand.u32 %s54, 1
        %s932 = scalar_lea.sflag [#allocation13], %s931
        %s933 = sand.u32 %s308, 1
        %s934 = smul.addr %s933, 16
        %s935 = scalar_lea.vmem [#allocation12], %s934
        // Predicated region
        $region117: #{tpu_custom_call.1} parent=95 // pred_check
          %p936 = pneg %p321
        $region118: #{tpu_custom_call.1} parent=95 // pred_check_branch
          %938 = sbr.rel (%p936) target = $region120
        $region119: #{tpu_custom_call.1} parent=95 // pred_region
          %940 = dma.done %s932, 256
        $region120: #{tpu_custom_call.1} parent=95 // pred_fallthru
          _
        %s941 = sand.u32 %s54, 1
        %s942 = scalar_lea.sflag [#allocation13], %s941
        %s943 = sand.u32 %s334, 1
        %s944 = scalar_lea.vmem [#allocation14], %s943
        // Predicated region
        $region121: #{tpu_custom_call.1} parent=95 // pred_check
          %p945 = pneg %p347
        $region122: #{tpu_custom_call.1} parent=95 // pred_check_branch
          %947 = sbr.rel (%p945) target = $region124
        $region123: #{tpu_custom_call.1} parent=95 // pred_region
          %949 = dma.done %s942, 16
        $region124: #{tpu_custom_call.1} parent=95 // pred_fallthru
          _
        %s950 = sand.u32 %s54, 1
        %s951 = scalar_lea.sflag [#allocation16], %s950
        %s952 = sand.u32 %s360, 1
        %s953 = scalar_lea.vmem [#allocation15], %s952
        // Predicated region
        $region125: #{tpu_custom_call.1} parent=95 // pred_check
          %p954 = pneg %p373
        $region126: #{tpu_custom_call.1} parent=95 // pred_check_branch
          %956 = sbr.rel (%p954) target = $region128
        $region127: #{tpu_custom_call.1} parent=95 // pred_region
          %958 = dma.done %s951, 16
        $region128: #{tpu_custom_call.1} parent=95 // pred_fallthru
          _
        %s959 = sand.u32 %s54, 1
        %s960 = scalar_lea.sflag [#allocation16], %s959
        %s961 = sand.u32 %s386, 1
        %s962 = scalar_lea.vmem [#allocation17], %s961
        // Predicated region
        $region129: #{tpu_custom_call.1} parent=95 // pred_check
          %p963 = pneg %p399
        $region130: #{tpu_custom_call.1} parent=95 // pred_check_branch
          %965 = sbr.rel (%p963) target = $region132
        $region131: #{tpu_custom_call.1} parent=95 // pred_region
          %967 = dma.done %s960, 16
        $region132: #{tpu_custom_call.1} parent=95 // pred_fallthru
          _
        %s968 = sand.u32 %s54, 1
        %s969 = scalar_lea.sflag [#allocation19], %s968
        %s970 = sand.u32 %s412, 1
        %s971 = smul.addr %s970, 16
        %s972 = scalar_lea.vmem [#allocation18], %s971
        // Predicated region
        $region133: #{tpu_custom_call.1} parent=95 // pred_check
          %p973 = pneg %p425
        $region134: #{tpu_custom_call.1} parent=95 // pred_check_branch
          %975 = sbr.rel (%p973) target = $region136
        $region135: #{tpu_custom_call.1} parent=95 // pred_region
          %977 = dma.done %s969, 256
        $region136: #{tpu_custom_call.1} parent=95 // pred_fallthru
          _
        %s978 = sand.u32 %s54, 1
        %s979 = scalar_lea.sflag [#allocation19], %s978
        %s980 = sand.u32 %s438, 1
        %s981 = scalar_lea.vmem [#allocation20], %s980
        // Predicated region
        $region137: #{tpu_custom_call.1} parent=95 // pred_check
          %p982 = pneg %p451
        $region138: #{tpu_custom_call.1} parent=95 // pred_check_branch
          %984 = sbr.rel (%p982) target = $region140
        $region139: #{tpu_custom_call.1} parent=95 // pred_region
          %986 = dma.done %s979, 16
        $region140: #{tpu_custom_call.1} parent=95 // pred_fallthru
          _
        %s987 = sand.u32 %s54, 1
        %s988 = scalar_lea.sflag [#allocation22], %s987
        %s989 = sand.u32 %s490, 1
        %s990 = scalar_lea.vmem [#allocation21], %s989
        // Predicated region
        $region141: #{tpu_custom_call.1} parent=95 // pred_check
          %p991 = pneg %p503
        $region142: #{tpu_custom_call.1} parent=95 // pred_check_branch
          %993 = sbr.rel (%p991) target = $region144
        $region143: #{tpu_custom_call.1} parent=95 // pred_region
          %995 = dma.done %s988, 16
        $region144: #{tpu_custom_call.1} parent=95 // pred_fallthru
          _
        %s996 = sand.u32 %s54, 1
        %s997 = scalar_lea.sflag [#allocation22], %s996
        %s998 = sand.u32 %s516, 1
        %s999 = scalar_lea.vmem [#allocation23], %s998
        // Predicated region
        $region145: #{tpu_custom_call.1} parent=95 // pred_check
          %p1000 = pneg %p529
        $region146: #{tpu_custom_call.1} parent=95 // pred_check_branch
          %1002 = sbr.rel (%p1000) target = $region148
        $region147: #{tpu_custom_call.1} parent=95 // pred_region
          %1004 = dma.done %s997, 16
        $region148: #{tpu_custom_call.1} parent=95 // pred_fallthru
          _
        %s1005 = sand.u32 %s74, 1
        %s1006 = scalar_lea.sflag [#allocation4], %s1005
        %s1007 = sand.u32 %s74, 1
        %s1008 = smul.addr %s1007, 8
        %s1009 = scalar_lea.vmem [#allocation3], %s1008
        %p1010 = pneg %p87
        %p1011 = pneg %p84
        %s1012 = sand.u32 %s54, 1
        %s1013 = scalar_lea.sflag [#allocation7], %s1012
        %s1014 = sand.u32 %s100, 1
        %s1015 = scalar_lea.vmem [#allocation6], %s1014
        %p1016 = pneg %p113
        %p1017 = pneg %p110
        %p1018 = scmp.lt.s32.totalorder %s58, 1
        %s1019 = scalar_select %p1018, %s58, 1
        %s1020 = smul.addr %s1019, 8
        %s1021 = scalar_lea.vmem %s2, %s1020
        %p1022 = pneg %p139
        %p1023 = pneg %p136
        %p1024 = scmp.lt.s32.totalorder %s59, 1
        %s1025 = scalar_select %p1024, %s59, 1
        %s1026 = smul.addr %s1025, 4
        %s1027 = smul.addr %s1026, 4
        %s1028 = scalar_lea.vmem %s3, %s1027
        %p1029 = pneg %p165
        %p1030 = pneg %p162
        %s1031 = sand.u32 %s54, 1
        %s1032 = scalar_lea.sflag [#allocation7], %s1031
        %s1033 = sand.u32 %s178, 1
        %s1034 = scalar_lea.vmem [#allocation8], %s1033
        %p1035 = pneg %p191
        %p1036 = pneg %p188
        %p1037 = scmp.lt.s32.totalorder %s59, 1
        %s1038 = scalar_select %p1037, %s59, 1
        %s1039 = smul.addr %s1038, 4
        %s1040 = smul.addr %s1039, 4
        %s1041 = scalar_lea.vmem %s5, %s1040
        %p1042 = pneg %p217
        %p1043 = pneg %p214
        %s1044 = sand.u32 %s54, 1
        %s1045 = scalar_lea.sflag [#allocation10], %s1044
        %s1046 = sand.u32 %s230, 1
        %s1047 = scalar_lea.vmem [#allocation9], %s1046
        %p1048 = pneg %p243
        %p1049 = pneg %p240
        %p1050 = scmp.lt.s32.totalorder %s59, 1
        %s1051 = scalar_select %p1050, %s59, 1
        %s1052 = smul.addr %s1051, 4
        %s1053 = smul.addr %s1052, 4
        %s1054 = scalar_lea.vmem %s7, %s1053
        %p1055 = pneg %p269
        %p1056 = pneg %p266
        %s1057 = sand.u32 %s54, 1
        %s1058 = scalar_lea.sflag [#allocation10], %s1057
        %s1059 = sand.u32 %s282, 1
        %s1060 = scalar_lea.vmem [#allocation11], %s1059
        %p1061 = pneg %p295
        %p1062 = pneg %p292
        %s1063 = sand.u32 %s54, 1
        %s1064 = scalar_lea.sflag [#allocation13], %s1063
        %s1065 = sand.u32 %s308, 1
        %s1066 = smul.addr %s1065, 16
        %s1067 = scalar_lea.vmem [#allocation12], %s1066
        %p1068 = pneg %p321
        %p1069 = pneg %p318
        %s1070 = sand.u32 %s54, 1
        %s1071 = scalar_lea.sflag [#allocation13], %s1070
        %s1072 = sand.u32 %s334, 1
        %s1073 = scalar_lea.vmem [#allocation14], %s1072
        %p1074 = pneg %p347
        %p1075 = pneg %p344
        %s1076 = sand.u32 %s54, 1
        %s1077 = scalar_lea.sflag [#allocation16], %s1076
        %s1078 = sand.u32 %s360, 1
        %s1079 = scalar_lea.vmem [#allocation15], %s1078
        %p1080 = pneg %p373
        %p1081 = pneg %p370
        %s1082 = sand.u32 %s54, 1
        %s1083 = scalar_lea.sflag [#allocation16], %s1082
        %s1084 = sand.u32 %s386, 1
        %s1085 = scalar_lea.vmem [#allocation17], %s1084
        %p1086 = pneg %p399
        %p1087 = pneg %p396
        %s1088 = sand.u32 %s54, 1
        %s1089 = scalar_lea.sflag [#allocation19], %s1088
        %s1090 = sand.u32 %s412, 1
        %s1091 = smul.addr %s1090, 16
        %s1092 = scalar_lea.vmem [#allocation18], %s1091
        %p1093 = pneg %p425
        %p1094 = pneg %p422
        %s1095 = sand.u32 %s54, 1
        %s1096 = scalar_lea.sflag [#allocation19], %s1095
        %s1097 = sand.u32 %s438, 1
        %s1098 = scalar_lea.vmem [#allocation20], %s1097
        %p1099 = pneg %p451
        %p1100 = pneg %p448
        %p1101 = scmp.lt.s32.totalorder %s59, 1
        %s1102 = scalar_select %p1101, %s59, 1
        %s1103 = smul.addr %s1102, 8
        %s1104 = smul.addr %s1103, 4
        %s1105 = scalar_lea.vmem %s15, %s1104
        %p1106 = pneg %p477
        %p1107 = pneg %p474
        %s1108 = sand.u32 %s54, 1
        %s1109 = scalar_lea.sflag [#allocation22], %s1108
        %s1110 = sand.u32 %s490, 1
        %s1111 = scalar_lea.vmem [#allocation21], %s1110
        %p1112 = pneg %p503
        %p1113 = pneg %p500
        %s1114 = sand.u32 %s54, 1
        %s1115 = scalar_lea.sflag [#allocation22], %s1114
        %s1116 = sand.u32 %s516, 1
        %s1117 = scalar_lea.vmem [#allocation23], %s1116
        %p1118 = pneg %p529
        %p1119 = pneg %p526
        %p1120 = scmp.lt.s32.totalorder %s59, 1
        %s1121 = scalar_select %p1120, %s59, 1
        %s1122 = scalar_lea.vmem %s18, %s1121
        %p1123 = pneg %p555
        %p1124 = pneg %p552
        %p1125 = pneg %p581
        %p1126 = pneg %p578
        %s1127 = sand.u32 %s568, 1
        %s1128 = scalar_lea.sflag [#allocation5], %s1127
        %s1129 = sand.u32 %s568, 1
        %s1130 = smul.addr %s1129, 8
        %s1131 = scalar_lea.vmem [#allocation24], %s1130
        %p1132 = scmp.lt.s32.totalorder %s58, 1
        %s1133 = scalar_select %p1132, %s58, 1
        %s1134 = smul.addr %s1133, 8
        %s1135 = scalar_lea.vmem %s2, %s1134
        %p1136 = scmp.lt.s32.totalorder %s59, 1
        %s1137 = scalar_select %p1136, %s59, 1
        %s1138 = smul.addr %s1137, 4
        %s1139 = smul.addr %s1138, 4
        %s1140 = scalar_lea.vmem %s3, %s1139
        %p1141 = scmp.lt.s32.totalorder %s59, 1
        %s1142 = scalar_select %p1141, %s59, 1
        %s1143 = smul.addr %s1142, 4
        %s1144 = smul.addr %s1143, 4
        %s1145 = scalar_lea.vmem %s5, %s1144
        %p1146 = scmp.lt.s32.totalorder %s59, 1
        %s1147 = scalar_select %p1146, %s59, 1
        %s1148 = smul.addr %s1147, 4
        %s1149 = smul.addr %s1148, 4
        %s1150 = scalar_lea.vmem %s7, %s1149
        %p1151 = scmp.lt.s32.totalorder %s59, 1
        %s1152 = scalar_select %p1151, %s59, 1
        %s1153 = smul.addr %s1152, 8
        %s1154 = smul.addr %s1153, 4
        %s1155 = scalar_lea.vmem %s15, %s1154
        %p1156 = scmp.lt.s32.totalorder %s59, 1
        %s1157 = scalar_select %p1156, %s59, 1
        %s1158 = scalar_lea.vmem %s18, %s1157
        %p1160 = scmp.eq.s32.totalorder %s59, 0
        // Predicated region
        $region149: #{tpu_custom_call.1} parent=95 // pred_check
          %p1161 = pneg %p1160
        $region150: #{tpu_custom_call.1} parent=95 // pred_check_branch
          %1163 = sbr.rel (%p1161) target = $region152
        $region151: #{tpu_custom_call.1} parent=95 // pred_region
          %v1164 = vld [vmem:[%s889] sm:$0xff]
          %vm1165 = vcmask 261120
          %1166 = vst.msk [vmem:[#allocation2] sm:$0xff] %vm1165, %v1164
        $region152: #{tpu_custom_call.1} parent=95 // pred_fallthru
          _
        %v1167 = vld [vmem:[#allocation2] sm:$0xff]
        %v1168 = vld [vmem:[%s898] sm:$0x1]
        %v1169 = vld [vmem:[%s1135] sm:$0xff]
        %v1170 = vpack.c.bf16 %v1167, %v1167
        %v1171 = vld [vmem:[%s1140] sm:$0xf]
        %v1172 = vld [vmem:[%s1140 + $0x4] sm:$0xf]
        %v1173 = vld [vmem:[%s1140 + $0x8] sm:$0xf]
        %v1174 = vld [vmem:[%s1140 + $0xc] sm:$0xf]
        %v1175 = vld [vmem:[%s907] sm:$0x1]
        %v1177 = vperm.slane %v1175, 0
        %v1183 = vunpack.c.l.b16 %v1171
        %v1184 = vunpack.c.l.b16 %v1172
        %v1185 = vunpack.c.l.b16 %v1173
        %v1186 = vunpack.c.l.b16 %v1174
        %v1187 = vpack.c.b16 %v1184, %v1183
        %v1188 = vpack.c.b16 %v1186, %v1185
        %vm1191 = vcmask 261120
        %v1193 = vsel %vm1191, %v1170, 0
        %1195 = vmatpush.bf16.msra.mxu0 0
        %1196 = vmatpush.bf16.msra.mxu0 0
        %1197 = vmatpush.bf16.msra.mxu0 0
        %1198 = vmatpush.bf16.msra.mxu0 0
        %1199 = vmatpush.bf16.msra.mxu0 0
        %1200 = vmatpush.bf16.msra.mxu0 0
        %1201 = vmatpush.bf16.msra.mxu0 %v1188
        %1202 = vmatpush.bf16.msra.mxu0 %v1187
        %1203 = vmatmul.bf16.gmra.mxu0 %v1193
        %v1204 = vpop.f32.mrf.mxu0
        %v1205 = vadd.f32 %v1177, %v1204
        %v1206 = vpop.f32.mrf.mxu0
        %1207 = vdwg.mxu0
        %v1208 = vld [vmem:[%s1145] sm:$0xf]
        %v1209 = vld [vmem:[%s1145 + $0x4] sm:$0xf]
        %v1210 = vld [vmem:[%s1145 + $0x8] sm:$0xf]
        %v1211 = vld [vmem:[%s1145 + $0xc] sm:$0xf]
        %v1212 = vld [vmem:[%s916] sm:$0x1]
        %v1214 = vperm.slane %v1212, 0
        %v1220 = vunpack.c.l.b16 %v1208
        %v1221 = vunpack.c.l.b16 %v1209
        %v1222 = vunpack.c.l.b16 %v1210
        %v1223 = vunpack.c.l.b16 %v1211
        %v1224 = vpack.c.b16 %v1221, %v1220
        %v1225 = vpack.c.b16 %v1223, %v1222
        %1228 = vmatpush.bf16.msra.mxu0 0
        %1229 = vmatpush.bf16.msra.mxu0 0
        %1230 = vmatpush.bf16.msra.mxu0 0
        %1231 = vmatpush.bf16.msra.mxu0 0
        %1232 = vmatpush.bf16.msra.mxu0 0
        %1233 = vmatpush.bf16.msra.mxu0 0
        %1234 = vmatpush.bf16.msra.mxu0 %v1225
        %1235 = vmatpush.bf16.msra.mxu0 %v1224
        %1236 = vmatmul.bf16.gmra.mxu0 %v1193
        %v1237 = vpop.f32.mrf.mxu0
        %v1238 = vadd.f32 %v1214, %v1237
        %v1239 = vpop.f32.mrf.mxu0
        %1240 = vdwg.mxu0
        %v1241 = vld [vmem:[%s1150] sm:$0xf]
        %v1242 = vld [vmem:[%s1150 + $0x4] sm:$0xf]
        %v1243 = vld [vmem:[%s1150 + $0x8] sm:$0xf]
        %v1244 = vld [vmem:[%s1150 + $0xc] sm:$0xf]
        %v1245 = vld [vmem:[%s925] sm:$0x1]
        %v1247 = vperm.slane %v1245, 0
        %v1253 = vunpack.c.l.b16 %v1241
        %v1254 = vunpack.c.l.b16 %v1242
        %v1255 = vunpack.c.l.b16 %v1243
        %v1256 = vunpack.c.l.b16 %v1244
        %v1257 = vpack.c.b16 %v1254, %v1253
        %v1258 = vpack.c.b16 %v1256, %v1255
        %1261 = vmatpush.bf16.msra.mxu0 0
        %1262 = vmatpush.bf16.msra.mxu0 0
        %1263 = vmatpush.bf16.msra.mxu0 0
        %1264 = vmatpush.bf16.msra.mxu0 0
        %1265 = vmatpush.bf16.msra.mxu0 0
        %1266 = vmatpush.bf16.msra.mxu0 0
        %1267 = vmatpush.bf16.msra.mxu0 %v1258
        %1268 = vmatpush.bf16.msra.mxu0 %v1257
        %1269 = vmatmul.bf16.gmra.mxu0 %v1193
        %v1270 = vpop.f32.mrf.mxu0
        %v1271 = vadd.f32 %v1247, %v1270
        %v1272 = vpop.f32.mrf.mxu0
        %1273 = vdwg.mxu0
        %v1274 = vmul.f32 %v1205, 0.25
        %v1275 = vpack.c.bf16 %v1274, %v1274
        %v1276 = vpack.c.bf16 %v1238, %v1238
        %v1277 = vpack.c.bf16 %v1271, %v1271
        %v1278 = vld [vmem:[%s935] sm:$0xf]
        %v1279 = vld [vmem:[%s935 + $0x4] sm:$0xf]
        %v1280 = vld [vmem:[%s935 + $0x8] sm:$0xf]
        %v1281 = vld [vmem:[%s935 + $0xc] sm:$0xf]
        %vm1282 = vcmask 130048
        %v1284 = vsel %vm1282, %v1275, 0
        %v1287 = vsel %vm1282, %v1276, 0
        %1289 = vmatpush.bf16.xpose.msra.mxu0 0
        %1290 = vmatpush.bf16.xpose.msra.mxu0 0
        %1291 = vmatpush.bf16.xpose.msra.mxu0 0
        %1292 = vmatpush.bf16.xpose.msra.mxu0 0
        %1293 = vmatpush.bf16.xpose.msra.mxu0 0
        %1294 = vmatpush.bf16.xpose.msra.mxu0 0
        %1295 = vmatpush.bf16.xpose.msra.mxu0 0
        %1296 = vmatpush.bf16.xpose.msra.mxu0 %v1287
        %1297 = vmatmul.bf16.gmra.mxu0 %v1284
        %v1298 = vpop.f32.mrf.mxu0
        %v1299 = vadd.f32 0.0, %v1298
        %v1300 = vpop.f32.mrf.mxu0
        %1301 = vdwg.mxu0
        %vm1302 = vcmp.gt.f32.partialorder %v1168, 0.0
        %v1303 = vsel %vm1302, 1, 0
        %v1304 = vperm.slane %v1303, 0
        %vm1305 = vcmp.eq.s32.totalorder %v1304, 1
        %v1306 = vsel %vm1305, %v1299, -1e+30
        %vm1307 = vcmask 64512
        %v1308 = vsel %vm1307, %v1306, -inf
        %1309 = vmax.xlane.f32.xlu0 %v1308
        %v1310 = vpop.xlane.xlu0 %1309
        %v1311 = vsub.f32 %v1306, %v1310
        %v1312 = vmul.f32 %v1311, 1.442695
        %v1313 = vpow.pop %v1312
        %v1314 = vsel %vm1307, %v1313, 0.0
        %1315 = vadd.xlane.f32.xlu0 %v1314
        %v1316 = vpop.xlane.xlu0 %1315
        %v1317 = vrcp.pop %v1316
        %v1318 = vmul.f32 %v1313, %v1317
        %v1319 = vpack.c.bf16 %v1318, %v1318
        %v1321 = vsel %vm1307, %v1319, 0
        %vm1323 = vcmask 1043456
        %v1325 = vsel %vm1323, %v1277, 0
        %1327 = vmatpush.bf16.msra.mxu0 0
        %1328 = vmatpush.bf16.msra.mxu0 0
        %1329 = vmatpush.bf16.msra.mxu0 0
        %1330 = vmatpush.bf16.msra.mxu0 0
        %1331 = vmatpush.bf16.msra.mxu0 0
        %1332 = vmatpush.bf16.msra.mxu0 0
        %1333 = vmatpush.bf16.msra.mxu0 0
        %1334 = vmatpush.bf16.msra.mxu0 %v1325
        %1335 = vmatmul.bf16.gmra.mxu0 %v1321
        %v1336 = vpop.f32.mrf.mxu0
        %v1337 = vadd.f32 0.0, %v1336
        %v1338 = vpop.f32.mrf.mxu0
        %1339 = vdwg.mxu0
        %v1340 = vpack.c.bf16 %v1337, %v1337
        %v1342 = vunpack.c.l.b16 %v1275
        %v1343 = vpack.c.b16 %v1342, %v1342
        %1344 = vrot.lane.b32.xlu0 %v1343, 112
        %v1345 = vpop.permute.xlu0 %1344
        %v1347 = vunpack.c.l.b16 %v1276
        %v1348 = vpack.c.b16 %v1347, %v1347
        %1349 = vrot.lane.b32.xlu0 %v1348, 112
        %v1350 = vpop.permute.xlu0 %1349
        %v1352 = vsel %vm1282, %v1345, 0
        %v1355 = vsel %vm1282, %v1350, 0
        %1357 = vmatpush.bf16.xpose.msra.mxu0 0
        %1358 = vmatpush.bf16.xpose.msra.mxu0 0
        %1359 = vmatpush.bf16.xpose.msra.mxu0 0
        %1360 = vmatpush.bf16.xpose.msra.mxu0 0
        %1361 = vmatpush.bf16.xpose.msra.mxu0 0
        %1362 = vmatpush.bf16.xpose.msra.mxu0 0
        %1363 = vmatpush.bf16.xpose.msra.mxu0 0
        %1364 = vmatpush.bf16.xpose.msra.mxu0 %v1355
        %1365 = vmatmul.bf16.gmra.mxu0 %v1352
        %v1366 = vpop.f32.mrf.mxu0
        %v1367 = vadd.f32 0.0, %v1366
        %v1368 = vpop.f32.mrf.mxu0
        %1369 = vdwg.mxu0
        %v1370 = vsel %vm1305, %v1367, -1e+30
        %v1371 = vsel %vm1307, %v1370, -inf
        %1372 = vmax.xlane.f32.xlu0 %v1371
        %v1373 = vpop.xlane.xlu0 %1372
        %v1374 = vsub.f32 %v1370, %v1373
        %v1375 = vmul.f32 %v1374, 1.442695
        %v1376 = vpow.pop %v1375
        %v1377 = vsel %vm1307, %v1376, 0.0
        %1378 = vadd.xlane.f32.xlu0 %v1377
        %v1379 = vpop.xlane.xlu0 %1378
        %v1380 = vrcp.pop %v1379
        %v1381 = vmul.f32 %v1376, %v1380
        %v1382 = vpack.c.bf16 %v1381, %v1381
        %v1384 = vunpack.c.l.b16 %v1277
        %v1385 = vpack.c.b16 %v1384, %v1384
        %1386 = vrot.lane.b32.xlu0 %v1385, 112
        %v1387 = vpop.permute.xlu0 %1386
        %v1389 = vsel %vm1307, %v1382, 0
        %v1392 = vsel %vm1323, %v1387, 0
        %1394 = vmatpush.bf16.msra.mxu0 0
        %1395 = vmatpush.bf16.msra.mxu0 0
        %1396 = vmatpush.bf16.msra.mxu0 0
        %1397 = vmatpush.bf16.msra.mxu0 0
        %1398 = vmatpush.bf16.msra.mxu0 0
        %1399 = vmatpush.bf16.msra.mxu0 0
        %1400 = vmatpush.bf16.msra.mxu0 0
        %1401 = vmatpush.bf16.msra.mxu0 %v1392
        %1402 = vmatmul.bf16.gmra.mxu0 %v1389
        %v1403 = vpop.f32.mrf.mxu0
        %v1404 = vadd.f32 0.0, %v1403
        %v1405 = vpop.f32.mrf.mxu0
        %1406 = vdwg.mxu0
        %v1407 = vpack.c.bf16 %v1404, %v1404
        %v1410 = vunpack.c.l.b16 %v1280
        %v1411 = vunpack.c.l.b16 %v1281
        %v1412 = vpack.c.b16 %v1411, %v1410
        %v1415 = vsel %vm1282, %v1407, 0
        %1417 = vmatpush.bf16.msra.mxu0 0
        %1418 = vmatpush.bf16.msra.mxu0 0
        %1419 = vmatpush.bf16.msra.mxu0 0
        %1420 = vmatpush.bf16.msra.mxu0 0
        %1421 = vmatpush.bf16.msra.mxu0 0
        %1422 = vmatpush.bf16.msra.mxu0 0
        %1423 = vmatpush.bf16.msra.mxu0 0
        %1424 = vmatpush.bf16.msra.mxu0 %v1412
        %1425 = vmatmul.bf16.gmra.mxu0 %v1415
        %v1426 = vpop.f32.mrf.mxu0
        %v1427 = vadd.f32 0.0, %v1426
        %v1428 = vpop.f32.mrf.mxu0
        %1429 = vdwg.mxu0
        %v1432 = vunpack.c.l.b16 %v1278
        %v1433 = vunpack.c.l.b16 %v1279
        %v1434 = vpack.c.b16 %v1433, %v1432
        %v1437 = vsel %vm1282, %v1340, 0
        %1439 = vmatpush.bf16.msra.mxu0 0
        %1440 = vmatpush.bf16.msra.mxu0 0
        %1441 = vmatpush.bf16.msra.mxu0 0
        %1442 = vmatpush.bf16.msra.mxu0 0
        %1443 = vmatpush.bf16.msra.mxu0 0
        %1444 = vmatpush.bf16.msra.mxu0 0
        %1445 = vmatpush.bf16.msra.mxu0 0
        %1446 = vmatpush.bf16.msra.mxu0 %v1434
        %1447 = vmatmul.bf16.gmra.mxu0 %v1437
        %v1448 = vpop.f32.mrf.mxu0
        %v1449 = vadd.f32 %v1427, %v1448
        %v1450 = vpop.f32.mrf.mxu0
        %1451 = vdwg.mxu0
        %v1452 = vld [vmem:[%s944] sm:$0x1]
        %v1454 = vperm.slane %v1452, 0
        %v1456 = vadd.f32 %v1449, %v1454
        %v1457 = vadd.f32 %v1456, %v1167
        %v1458 = vld [vmem:[%s953] sm:$0x1]
        %v1459 = vld [vmem:[%s962] sm:$0x1]
        %v1460 = vsel %vm1191, %v1457, 0.0
        %1461 = vadd.xlane.f32.xlu0 %v1460
        %v1462 = vpop.xlane.xlu0 %1461
        %v1463 = vrcp.pop 32.0
        %v1464 = vmul.f32 32.0, %v1463
        %v1465 = vsub.f32 1.0, %v1464
        %v1466 = vmul.f32 %v1463, %v1465
        %v1467 = vadd.f32 %v1463, %v1466
        %vm1468 = vweird.f32 %v1463
        %v1469 = vsel %vm1468, %v1463, %v1467
        %v1470 = vmul.f32 %v1462, %v1469
        %v1471 = vsub.f32 %v1457, %v1470
        %v1472 = vmul.f32 %v1471, %v1471
        %v1473 = vsel %vm1191, %v1472, 0.0
        %1474 = vadd.xlane.f32.xlu0 %v1473
        %v1475 = vpop.xlane.xlu0 %1474
        %v1476 = vmul.f32 %v1475, %v1469
        %v1477 = vadd.f32 %v1476, 1e-05
        %v1478 = vrsqrt.pop %v1477
        %v1479 = vmul.f32 %v1478, %v1477
        %v1480 = vmul.f32 %v1479, %v1478
        %v1481 = vmul.f32 0.5, %v1480
        %v1482 = vsub.f32 1.5, %v1481
        %v1483 = vmul.f32 %v1478, %v1482
        %vm1484 = vweird.f32 %v1477
        %vm1485 = vweird.f32 %v1478
        %vm1486 = vmor %vm1484, %vm1485
        %v1487 = vsel %vm1486, %v1478, %v1483
        %v1488 = vmul.f32 %v1471, %v1487
        %v1490 = vperm.slane %v1458, 0
        %v1492 = vmul.f32 %v1488, %v1490
        %v1494 = vperm.slane %v1459, 0
        %v1496 = vadd.f32 %v1492, %v1494
        %1498 = vset.pattern.permute.xlu0 0
        %1499 = vperm.xlu0 %1498, %v1169
        %v1500 = vpop.permute.xlu0 %1499
        %v1502 = vmul.f32 %v1496, %v1500
        %v1503 = vpack.c.bf16 %v1502, %v1502
        %v1504 = vld [vmem:[%s972] sm:$0xf]
        %v1505 = vld [vmem:[%s972 + $0x4] sm:$0xf]
        %v1506 = vld [vmem:[%s972 + $0x8] sm:$0xf]
        %v1507 = vld [vmem:[%s972 + $0xc] sm:$0xf]
        %v1508 = vld [vmem:[%s981] sm:$0x1]
        %v1510 = vperm.slane %v1508, 0
        %v1516 = vunpack.c.l.b16 %v1504
        %v1517 = vunpack.c.l.b16 %v1505
        %v1518 = vunpack.c.l.b16 %v1506
        %v1519 = vunpack.c.l.b16 %v1507
        %v1520 = vpack.c.b16 %v1517, %v1516
        %v1521 = vpack.c.b16 %v1519, %v1518
        %v1525 = vsel %vm1191, %v1503, 0
        %1527 = vmatpush.bf16.msra.mxu0 0
        %1528 = vmatpush.bf16.msra.mxu0 0
        %1529 = vmatpush.bf16.msra.mxu0 0
        %1530 = vmatpush.bf16.msra.mxu0 0
        %1531 = vmatpush.bf16.msra.mxu0 0
        %1532 = vmatpush.bf16.msra.mxu0 0
        %1533 = vmatpush.bf16.msra.mxu0 %v1521
        %1534 = vmatpush.bf16.msra.mxu0 %v1520
        %1535 = vmatmul.bf16.gmra.mxu0 %v1525
        %v1536 = vpop.f32.mrf.mxu0
        %v1537 = vadd.f32 %v1510, %v1536
        %v1538 = vpop.f32.mrf.mxu0
        %1539 = vdwg.mxu0
        %v1540 = vmax.f32 %v1537, 0.0
        %v1541 = vpack.c.bf16 %v1540, %v1540
        %v1542 = vld [vmem:[%s1155] sm:$0xf]
        %v1543 = vld [vmem:[%s1155 + $0x4] sm:$0xf]
        %v1544 = vld [vmem:[%s1155 + $0x8] sm:$0xf]
        %v1545 = vld [vmem:[%s1155 + $0xc] sm:$0xf]
        %v1546 = vld [vmem:[%s1155 + $0x10] sm:$0xf]
        %v1547 = vld [vmem:[%s1155 + $0x14] sm:$0xf]
        %v1548 = vld [vmem:[%s1155 + $0x18] sm:$0xf]
        %v1549 = vld [vmem:[%s1155 + $0x1c] sm:$0xf]
        %v1550 = vld [vmem:[%s990] sm:$0x1]
        %v1552 = vperm.slane %v1550, 0
        %v1562 = vunpack.c.l.b16 %v1542
        %v1563 = vunpack.c.l.b16 %v1543
        %v1564 = vunpack.c.l.b16 %v1544
        %v1565 = vunpack.c.l.b16 %v1545
        %v1566 = vunpack.c.l.b16 %v1546
        %v1567 = vunpack.c.l.b16 %v1547
        %v1568 = vunpack.c.l.b16 %v1548
        %v1569 = vunpack.c.l.b16 %v1549
        %v1570 = vpack.c.b16 %v1563, %v1562
        %v1571 = vpack.c.b16 %v1565, %v1564
        %v1572 = vpack.c.b16 %v1567, %v1566
        %v1573 = vpack.c.b16 %v1569, %v1568
        %vm1578 = vcmask 523264
        %v1580 = vsel %vm1578, %v1541, 0
        %1582 = vmatpush.bf16.msra.mxu0 0
        %1583 = vmatpush.bf16.msra.mxu0 0
        %1584 = vmatpush.bf16.msra.mxu0 0
        %1585 = vmatpush.bf16.msra.mxu0 0
        %1586 = vmatpush.bf16.msra.mxu0 %v1573
        %1587 = vmatpush.bf16.msra.mxu0 %v1572
        %1588 = vmatpush.bf16.msra.mxu0 %v1571
        %1589 = vmatpush.bf16.msra.mxu0 %v1570
        %1590 = vmatmul.bf16.gmra.mxu0 %v1580
        %v1591 = vpop.f32.mrf.mxu0
        %v1592 = vadd.f32 %v1552, %v1591
        %v1593 = vpop.f32.mrf.mxu0
        %1594 = vdwg.mxu0
        %v1595 = vadd.f32 %v1592, %v1502
        %v1596 = vld [vmem:[%s999] sm:$0x1]
        %v1597 = vld [vmem:[%s1158] sm:$0x1]
        %v1598 = vsel %vm1191, %v1595, 0.0
        %1599 = vadd.xlane.f32.xlu0 %v1598
        %v1600 = vpop.xlane.xlu0 %1599
        %v1601 = vmul.f32 %v1600, %v1469
        %v1602 = vsub.f32 %v1595, %v1601
        %v1603 = vmul.f32 %v1602, %v1602
        %v1604 = vsel %vm1191, %v1603, 0.0
        %1605 = vadd.xlane.f32.xlu0 %v1604
        %v1606 = vpop.xlane.xlu0 %1605
        %v1607 = vmul.f32 %v1606, %v1469
        %v1608 = vadd.f32 %v1607, 1e-05
        %v1609 = vrsqrt.pop %v1608
        %v1610 = vmul.f32 %v1609, %v1608
        %v1611 = vmul.f32 %v1610, %v1609
        %v1612 = vmul.f32 0.5, %v1611
        %v1613 = vsub.f32 1.5, %v1612
        %v1614 = vmul.f32 %v1609, %v1613
        %vm1615 = vweird.f32 %v1608
        %vm1616 = vweird.f32 %v1609
        %vm1617 = vmor %vm1615, %vm1616
        %v1618 = vsel %vm1617, %v1609, %v1614
        %v1619 = vmul.f32 %v1602, %v1618
        %v1621 = vperm.slane %v1596, 0
        %v1623 = vmul.f32 %v1619, %v1621
        %v1625 = vperm.slane %v1597, 0
        %v1627 = vadd.f32 %v1623, %v1625
        %v1628 = vmul.f32 %v1627, %v1500
        %1629 = vst.msk [vmem:[#allocation2] sm:$0xff] %vm1191, %v1628
        %p1630 = scmp.eq.s32.totalorder %s59, 1
        // Predicated region
        $region153: #{tpu_custom_call.1} parent=95 // pred_check
          %p1631 = pneg %p1630
        $region154: #{tpu_custom_call.1} parent=95 // pred_check_branch
          %1633 = sbr.rel (%p1631) target = $region156
        $region155: #{tpu_custom_call.1} parent=95 // pred_region
          %1634 = vst.msk [vmem:[%s1131] sm:$0xff] %vm1191, %v1628
        $region156: #{tpu_custom_call.1} parent=95 // pred_fallthru
          _
        %s1635 = sand.u32 %s568, 1
        %s1636 = scalar_lea.sflag [#allocation5], %s1635
        %s1637 = sand.u32 %s568, 1
        %s1638 = smul.addr %s1637, 8
        %s1639 = scalar_lea.vmem [#allocation24], %s1638
        // Predicated region
        $region157: #{tpu_custom_call.1} parent=95 // pred_check
          %p1640 = pneg %p578
        $region158: #{tpu_custom_call.1} parent=95 // pred_check_branch
          %1642 = sbr.rel (%p1640) target = $region160
        $region159: #{tpu_custom_call.1} parent=95 // pred_region
          %1644 = vsyncadd %s1636, 0
          %s1645 = smul.addr %s58, 8
          %s1646 = scalar_lea.hbm %s19, %s1645
          %s1648 = sshll.u32 %s1639, 4
          %s1649 = int_to_ptr.vmem [resolvable:$true] %s1648
          %s1650 = sshll.u32 %s1646, 4
          %s1651 = int_to_ptr.hbm [resolvable:$true] %s1650
          %1653 = dma.vmem_to_hbm [thread:$0]  %s1649, 128, %s1651, %s1636
        $region160: #{tpu_custom_call.1} parent=95 // pred_fallthru
          _
      $region96: #{tpu_custom_call.1} parent=5 // pred_fallthru
        _
      %p1654 = scmp.le.s32.totalorder 2, %s49
      // Predicated region
      $region161: #{tpu_custom_call.1} parent=5 // pred_check
        %p1655 = pneg %p1654
      $region162: #{tpu_custom_call.1} parent=5 // pred_check_branch
        %1657 = sbr.rel (%p1655) target = $region164
      $region163: #{tpu_custom_call.1} parent=5 // pred_region
        %s1658 = ssub.s32 %s49, 2
        // Predicated region
        $region165: #{tpu_custom_call.1} parent=163 // pred_check
          %p1659 = pneg %p584
        $region166: #{tpu_custom_call.1} parent=163 // pred_check_branch
          %1661 = sbr.rel (%p1659) target = $region168
        $region167: #{tpu_custom_call.1} parent=163 // pred_region
          %s1662 = sand.u32 %s569, 1
          %s1663 = scalar_lea.sflag [#allocation5], %s1662
          %s1664 = sand.u32 %s569, 1
          %s1665 = smul.addr %s1664, 8
          %s1666 = scalar_lea.vmem [#allocation24], %s1665
          %1668 = dma.done %s1663, 128
        $region168: #{tpu_custom_call.1} parent=163 // pred_fallthru
          _
      $region164: #{tpu_custom_call.1} parent=5 // pred_fallthru
        _
    $region6: #{tpu_custom_call.1} parent=1 // loop_footer
      %s53 = sadd.s32 1, %s49
    $region7: #{tpu_custom_call.1} parent=1 // loop_footer_branch
      %48 = sbr.rel target = $region3
    $region8: #{tpu_custom_call.1} parent=1 // loop_exit
      _
    %1669 = vsyncpa [#allocation4], 1
    %s1670 = scalar_lea.sflag [#allocation4], 1
    %1671 = vsyncpa %s1670, 1
    %1672 = vsyncpa [#allocation7], 1
    %s1673 = scalar_lea.sflag [#allocation7], 1
    %1674 = vsyncpa %s1673, 1
    %1675 = vsyncpa [#allocation10], 1
    %s1676 = scalar_lea.sflag [#allocation10], 1
    %1677 = vsyncpa %s1676, 1
    %1678 = vsyncpa [#allocation13], 1
    %s1679 = scalar_lea.sflag [#allocation13], 1
    %1680 = vsyncpa %s1679, 1
    %1681 = vsyncpa [#allocation16], 1
    %s1682 = scalar_lea.sflag [#allocation16], 1
    %1683 = vsyncpa %s1682, 1
    %1684 = vsyncpa [#allocation19], 1
    %s1685 = scalar_lea.sflag [#allocation19], 1
    %1686 = vsyncpa %s1685, 1
    %1687 = vsyncpa [#allocation22], 1
    %s1688 = scalar_lea.sflag [#allocation22], 1
    %1689 = vsyncpa %s1688, 1
    %1690 = vsyncpa [#allocation5], 1
    %s1691 = scalar_lea.sflag [#allocation5], 1
    %1692 = vsyncpa %s1691, 1

</llo_original>
